<compile_context>
chip_gen: v7x
topology: tpu7x:2x2x1
jax: 0.10.0
libtpu: 0.0.40
codegen_flags: <defaults>
</compile_context>

<pallas_src>
import functools
import math

import jax
import jax.numpy as jnp
from jax.experimental import pallas as pl
from jax.experimental.pallas import tpu as pltpu

_LOG2E = 1.4426950408889634
_VMEM_TILE_BUDGET = 24 * 1024 * 1024   # target working set; hard limit capped at 32 MiB


def _round_up(x, m):
    return ((x + m - 1) // m) * m


def _flash_attn_kernel(q_ref, k_ref, v_ref, o_ref,
                       qs_sc, m_sc, l_sc, acc_sc, *, scale, kv_len, kv_tile):
    """One (batch*head, q_tile, kv_tile) grid step of non-causal flash attention.

    Online softmax is kept in the log2 domain: scale*log2(e) is folded into the q
    pre-scale once per q tile, so the inner loop uses exp2 (the native EUP op).
    """
    ki = pl.program_id(2)

    @pl.when(ki == 0)
    def _():
        # q block is resident across the kv axis: fold the scale in once per q tile.
        qs_sc[...] = (q_ref[...].astype(jnp.float32) * (scale * _LOG2E)
                      ).astype(qs_sc.dtype)
        m_sc[...] = jnp.full_like(m_sc, -jnp.inf)
        l_sc[...] = jnp.zeros_like(l_sc)
        acc_sc[...] = jnp.zeros_like(acc_sc)

    q = qs_sc[...]                 # (tq, D) native dtype, pre-scaled by scale*log2(e)
    k = k_ref[...]                 # (tk, D)
    v = v_ref[...]                 # (tk, D)

    # QK^T on the MXU in the native (bf16) dtype, f32 accumulation.
    s = jax.lax.dot_general(q, k, (((1,), (1,)), ((), ())),
                            preferred_element_type=jnp.float32)      # (tq, tk)

    if kv_len % kv_tile != 0:
        # Static branch: only traced when the kv axis was padded; mask padded keys.
        col = ki * kv_tile + jax.lax.broadcasted_iota(jnp.int32, s.shape, 1)
        s = jnp.where(col < kv_len, s, -jnp.inf)

    m_prev = m_sc[...]                                         # (tq, R) lane-replicated
    m_new = jnp.maximum(m_prev, s.max(axis=-1, keepdims=True))  # (tq, R)
    m_col = m_new[:, 0:1]                                       # (tq, 1)
    alpha = jnp.exp2(m_prev[:, 0:1] - m_col)                    # (tq, 1)
    p = jnp.exp2(s - m_col)                                     # (tq, tk) f32

    l_sc[...] = alpha * l_sc[...] + p.sum(axis=-1, keepdims=True)
    acc_sc[...] = alpha * acc_sc[...] + jnp.dot(
        p.astype(v.dtype), v, preferred_element_type=jnp.float32)
    m_sc[...] = m_new

    @pl.when(ki == pl.num_programs(2) - 1)
    def _():
        # approx reciprocal (~2^-12 rel err) is fine for a bf16 output.
        inv_l = pl.reciprocal(l_sc[...], approx=True)
        o_ref[...] = (acc_sc[...] * inv_l).astype(o_ref.dtype)


def _default_tiles():
    """tq drives arithmetic intensity (K/V re-streaming amortizes over tq).

    v6e/v7x need ~620-650 FLOPs/byte to be MXU-bound -> tq=1024.
    v5e/v4 need only ~240 -> tq=512 is already MXU-bound; bigger just adds pressure.
    """
    try:
        kind = jax.devices()[0].device_kind.lower()
    except Exception:
        kind = ""
    if "v2" in kind or "v3" in kind or "v4" in kind or "v5" in kind:
        return 512, 1024
    return 1024, 1024


def _pick_tile(seq, desired):
    """Tile <= desired: prefer exact divisors; otherwise allow modest padding."""
    desired = max(128, desired)
    if seq <= desired:
        return seq                      # single full-axis block (full-dim rule)
    t = desired
    while t >= 128:
        if seq % t == 0:
            return t
        t //= 2
    allowed_pad = max(127, seq // 8)    # accept <= ~12.5% padding, prefer big tiles
    t = desired
    while t >= 128:
        if _round_up(seq, t) - seq <= allowed_pad:
            return t
        t //= 2
    return 128


def _vmem_estimate(tq, tk, d, itemsize):
    rep = d if d % 128 == 0 else 1
    blocks = 2 * (2 * tq * d + 2 * tk * d) * itemsize            # double-buffered q,k,v,o
    scratch = tq * d * itemsize + 2 * tq * rep * 4 + tq * d * 4  # qs, m, l, acc
    inter = 2 * tq * tk * 4 + tq * tk * itemsize                 # s/p f32 + p bf16 cast
    return blocks + scratch + inter


def flash_attention_sbhd(q, k, v, *, scale=None, tq=None, tk=None):
    """Exact non-causal softmax attention on (S, B, H, D) inputs -> (Sq, B, H, D).

    The (S,B,H,D) layout is consumed directly: tensors are viewed as (S, B*H*D)
    2-D arrays (free reshape) and the kernel addresses per-(b,h) tiles via column
    blocks of width D, so no transposes are ever materialized in HBM.
    """
    Sq, B, H, D = q.shape
    Sk = k.shape[0]
    assert k.shape == (Sk, B, H, D) and v.shape == (Sk, B, H, D)
    # TODO(synk): the zero-copy column-block layout needs D % 128 == 0 (the module's
    # HyperAttention path uses head_dim=128); other head dims would need a fallback.
    assert D % 128 == 0, f"head_dim must be a multiple of 128, got {D}"
    if scale is None:
        scale = D ** (-0.5)
    itemsize = jnp.dtype(q.dtype).itemsize
    BH = B * H

    dtq, dtk = _default_tiles()
    tq = dtq if tq is None else tq
    tk = dtk if tk is None else tk
    # Shrink desired tiles until the working set fits comfortably in scoped VMEM
    # (stays well below v7x's 64 MiB physical VMEM / 32 MiB default scoped budget).
    while _vmem_estimate(tq, tk, D, itemsize) > _VMEM_TILE_BUDGET and tk > 256:
        tk //= 2
    while _vmem_estimate(tq, tk, D, itemsize) > _VMEM_TILE_BUDGET and tq > 256:
        tq //= 2
    tq = _pick_tile(Sq, tq)
    tk = _pick_tile(Sk, tk)

    # Free reshapes: merge the trailing contiguous dims.
    qf = q.reshape(Sq, BH * D)
    kf = k.reshape(Sk, BH * D)
    vf = v.reshape(Sk, BH * D)

    # Pad awkward sequence lengths up to a tile multiple (padded keys are masked
    # with -inf in the kernel; padded query rows are sliced off afterwards).
    Sq_p = _round_up(Sq, tq)
    Sk_p = _round_up(Sk, tk)
    if Sq_p != Sq:
        qf = jnp.pad(qf, ((0, Sq_p - Sq), (0, 0)))
    if Sk_p != Sk:
        kf = jnp.pad(kf, ((0, Sk_p - Sk), (0, 0)))
        vf = jnp.pad(vf, ((0, Sk_p - Sk), (0, 0)))

    grid = (BH, Sq_p // tq, Sk_p // tk)
    rep = D if D % 128 == 0 else 1      # lane-replicated m/l scratch

    est = _vmem_estimate(tq, tk, D, itemsize)
    vmem_limit = min(32 * 1024 * 1024, max(16 * 1024 * 1024, int(1.5 * est)))

    n_q_tiles = Sq_p // tq
    cost = pl.CostEstimate(
        flops=4 * BH * Sq * Sk * D,
        transcendentals=BH * Sq * Sk,
        bytes_accessed=itemsize * (2 * BH * Sq * D + 2 * BH * Sk * D * n_q_tiles),
    )

    out = pl.pallas_call(
        functools.partial(_flash_attn_kernel, scale=scale, kv_len=Sk, kv_tile=tk),
        out_shape=jax.ShapeDtypeStruct((Sq_p, BH * D), q.dtype),
        grid_spec=pltpu.PrefetchScalarGridSpec(
            num_scalar_prefetch=0,
            grid=grid,
            in_specs=[
                pl.BlockSpec((tq, D), lambda b, qi, ki: (qi, b)),   # q[b,h] column tile
                pl.BlockSpec((tk, D), lambda b, qi, ki: (ki, b)),   # k[b,h]
                pl.BlockSpec((tk, D), lambda b, qi, ki: (ki, b)),   # v[b,h]
            ],
            out_specs=pl.BlockSpec((tq, D), lambda b, qi, ki: (qi, b)),
            scratch_shapes=[
                pltpu.VMEM((tq, D), q.dtype),        # pre-scaled q tile
                pltpu.VMEM((tq, rep), jnp.float32),  # running max (lane-replicated)
                pltpu.VMEM((tq, rep), jnp.float32),  # running denom (lane-replicated)
                pltpu.VMEM((tq, D), jnp.float32),    # running numerator
            ],
        ),
        compiler_params=pltpu.CompilerParams(
            dimension_semantics=("parallel", "parallel", "arbitrary"),
            vmem_limit_bytes=vmem_limit,
        ),
        cost_estimate=cost,
    )(qf, kf, vf)

    if Sq_p != Sq:
        out = out[:Sq, :]
    return out.reshape(Sq, B, H, D)     # free reshape back to the native layout


class FastCoreAttention:
    """JAX/Pallas port of quest's FastCoreAttention (attn_method='hyper')."""

    def __init__(self, config, layer_number, **kwargs):
        self.apply_query_key_layer_scaling = getattr(
            config, "apply_query_key_layer_scaling", False)
        self.attention_softmax_in_fp32 = getattr(
            config, "attention_softmax_in_fp32", False)
        if self.apply_query_key_layer_scaling:
            self.attention_softmax_in_fp32 = True
        self.layer_number = max(1, layer_number)

        projection_size = None
        if hasattr(config, "kv_channels"):
            projection_size = config.kv_channels * config.num_attention_heads
        if hasattr(config, "num_key_value_heads"):
            projection_size = config.num_key_value_heads * config.num_attention_heads
        self.hidden_size_per_partition = projection_size
        self.hidden_size_per_attention_head = projection_size // config.num_attention_heads
        self.num_attention_heads_per_partition = config.num_attention_heads

        coeff = None
        self.norm_factor = math.sqrt(self.hidden_size_per_attention_head)
        if self.apply_query_key_layer_scaling:
            coeff = self.layer_number
            self.norm_factor *= coeff
        self.coeff = coeff
        # attention_dropout exists in the PyTorch module but is never applied on the
        # 'hyper'/'prefill' forward paths, so it is intentionally a no-op here.
        self.attention_dropout_p = getattr(config, "attention_dropout", 0.0)

        self.attn_method = kwargs.get("attn_method")
        if self.attn_method in ["hyper", "hyper-cuda"]:
            # TODO(synk): lsh/sample params only affect HyperAttention's approximate
            # branch (seq_len > min_seq_len), which is not reproduced; min_seq_len is
            # therefore never consulted and exact attention is always used.
            self.lsh_num_projs = kwargs.get("lsh_num_projs")
            self.block_size = kwargs.get("block_size")
            self.sample_size = kwargs.get("sample_size")
            self.min_seq_len = kwargs.get("min_seq_len")
        elif self.attn_method == "prefill":
            self.lsh_num_projs = kwargs.get("lsh_num_projs")
            self.block_size = kwargs.get("block_size")
        else:
            raise NotImplementedError("Invalid attn_method option")

    def __call__(self, query_layer, key_layer, value_layer, attention_mask):
        # No layout permutes: the kernel consumes the native (S, B, H, D) layout
        # directly via column-block indexing, and its output reshapes for free into
        # the module's (S, B, H*D) result.
        if (self.attn_method in ["hyper", "hyper-cuda"]
                and attention_mask is None
                and query_layer.shape[0] == key_layer.shape[0]):
            softmax_scale = query_layer.shape[-1] ** (-0.5)
            # HyperAttention exact path: non-causal attention, scale = D**-0.5.
            context_layer = flash_attention_sbhd(
                query_layer, key_layer, value_layer, scale=softmax_scale)
        elif self.attn_method == "prefill":
            # TODO(synk): PrefillQAttention (quantized-query prefill) not reproduced;
            # fall back to exact non-causal attention (attention_mask ignored).
            context_layer = flash_attention_sbhd(
                query_layer, key_layer, value_layer,
                scale=query_layer.shape[-1] ** (-0.5))
        else:
            raise AssertionError(
                "this part the query length and key length may be different "
                "and not be a computational bottleneck.")

        # context_layer: (S, B, H, D) -> (S, B, hidden_size_per_partition)
        new_shape = context_layer.shape[:-2] + (self.hidden_size_per_partition,)
        return context_layer.reshape(new_shape)


def _reference_attention(q_sbhd, k_sbhd, v_sbhd, scale):
    """Pure-JAX reference of the module forward (f32 math), output (S, B, H*D)."""
    q = jnp.transpose(q_sbhd, (1, 2, 0, 3)).astype(jnp.float32)
    k = jnp.transpose(k_sbhd, (1, 2, 0, 3)).astype(jnp.float32)
    v = jnp.transpose(v_sbhd, (1, 2, 0, 3)).astype(jnp.float32)
    s = jnp.einsum("bhqd,bhkd->bhqk", q, k) * scale
    p = jax.nn.softmax(s, axis=-1)
    ctx = jnp.einsum("bhqk,bhkd->bhqd", p, v)
    ctx = jnp.transpose(ctx, (2, 0, 1, 3))            # (S, B, H, D)
    S, B, H, D = ctx.shape
    return ctx.reshape(S, B, H * D)


if __name__ == "__main__":
    class _Config:
        num_attention_heads = 2
        kv_channels = 128                 # head_dim = 128 (HyperAttention input_dim)
        attention_dropout = 0.0

    # --- Test 1: module forward on the aligned fast path -------------------------
    S, B, H, D = 256, 2, 2, 128
    key = jax.random.PRNGKey(0)
    kq, kk, kv_ = jax.random.split(key, 3)
    q = jax.random.normal(kq, (S, B, H, D), dtype=jnp.float32).astype(jnp.bfloat16)
    k = jax.random.normal(kk, (S, B, H, D), dtype=jnp.float32).astype(jnp.bfloat16)
    v = jax.random.normal(kv_, (S, B, H, D), dtype=jnp.float32).astype(jnp.bfloat16)

    attn = FastCoreAttention(_Config(), layer_number=1, attn_method="hyper",
                             lsh_num_projs=7, block_size=128, sample_size=128,
                             min_seq_len=4096)

    out = attn(q, k, v, attention_mask=None)
    out = jax.block_until_ready(out)

    ref = _reference_attention(q, k, v, D ** (-0.5))
    assert out.shape == (S, B, H * D), out.shape
    err = jnp.max(jnp.abs(out.astype(jnp.float32) - ref))
    assert jnp.allclose(out.astype(jnp.float32), ref, atol=6e-2, rtol=6e-2), \
        f"mismatch vs reference (test 1), max abs err = {err}"

    # --- Test 2: awkward kv length exercises the pad + (-inf) mask path ----------
    Sq2, Sk2 = 128, 1344
    kq2, kk2, kv2 = jax.random.split(jax.random.PRNGKey(0), 3)
    q2 = jax.random.normal(kq2, (Sq2, 1, 1, D), dtype=jnp.float32).astype(jnp.bfloat16)
    k2 = jax.random.normal(kk2, (Sk2, 1, 1, D), dtype=jnp.float32).astype(jnp.bfloat16)
    v2 = jax.random.normal(kv2, (Sk2, 1, 1, D), dtype=jnp.float32).astype(jnp.bfloat16)
    out2 = jax.block_until_ready(flash_attention_sbhd(q2, k2, v2))
    ref2 = _reference_attention(q2, k2, v2, D ** (-0.5)).reshape(Sq2, 1, 1, D)
    err2 = jnp.max(jnp.abs(out2.astype(jnp.float32) - ref2))
    assert jnp.allclose(out2.astype(jnp.float32), ref2, atol=6e-2, rtol=6e-2), \
        f"mismatch vs reference (test 2, masked kv padding), max abs err = {err2}"

    print("KERNEL_OK")
</pallas_src>

<mosaic_0001>
module attributes {stable_mosaic.version = 11 : i64} {
  func.func @_flash_attn_kernel(%arg0: i32, %arg1: i32, %arg2: i32, %arg3: memref<256x128xbf16, #tpu.memory_space<vmem>>, %arg4: memref<256x128xbf16, #tpu.memory_space<vmem>>, %arg5: memref<256x128xbf16, #tpu.memory_space<vmem>>, %arg6: memref<256x128xbf16, #tpu.memory_space<vmem>>, %arg7: memref<256x128xbf16, #tpu.memory_space<vmem>>, %arg8: memref<256x128xf32, #tpu.memory_space<vmem>>, %arg9: memref<256x128xf32, #tpu.memory_space<vmem>>, %arg10: memref<256x128xf32, #tpu.memory_space<vmem>>) attributes {dimension_semantics = [#tpu.dimension_semantics<parallel>, #tpu.dimension_semantics<parallel>, #tpu.dimension_semantics<arbitrary>], iteration_bounds = array<i64: 4, 1, 1>, scalar_prefetch = 0 : i64, scratch_operands = 4 : i64, tpu.core_type = #tpu.core_type<tc>, window_params = [{transform_indices = @transform_0, window_bounds = array<i64: 256, 128>}, {transform_indices = @transform_1, window_bounds = array<i64: 256, 128>}, {transform_indices = @transform_2, window_bounds = array<i64: 256, 128>}, {transform_indices = @transform_3, window_bounds = array<i64: 256, 128>}]} {
    %c0_i32 = arith.constant 0 : i32
    %0 = arith.cmpi eq, %arg2, %c0_i32 : i32
    %1 = arith.extui %0 : i1 to i32
    %c0_i32_0 = arith.constant 0 : i32
    %2 = arith.cmpi ne, %1, %c0_i32_0 : i32
    scf.if %2 {
      %c0_23 = arith.constant 0 : index
      %c0_24 = arith.constant 0 : index
      %38 = vector.load %arg3[%c0_23, %c0_24] : memref<256x128xbf16, #tpu.memory_space<vmem>>, vector<256x128xbf16>
      %39 = arith.extf %38 : vector<256x128xbf16> to vector<256x128xf32>
      %cst_25 = arith.constant 0.127517432 : f32
      %40 = vector.broadcast %cst_25 : f32 to vector<256x128xf32>
      %41 = arith.mulf %39, %40 : vector<256x128xf32>
      %42 = arith.truncf %41 : vector<256x128xf32> to vector<256x128xbf16>
      %c0_26 = arith.constant 0 : index
      %c0_27 = arith.constant 0 : index
      %43 = vector.load %arg7[%c0_26, %c0_27] : memref<256x128xbf16, #tpu.memory_space<vmem>>, vector<256x128xbf16>
      tpu.vector_store %arg7[%c0_26, %c0_27], %42 {strides = array<i32>} : memref<256x128xbf16, #tpu.memory_space<vmem>>, vector<256x128xbf16>,
      %cst_28 = arith.constant 0xFF800000 : f32
      %44 = vector.broadcast %cst_28 : f32 to vector<256x128xf32>
      %c0_29 = arith.constant 0 : index
      %c0_30 = arith.constant 0 : index
      %45 = vector.load %arg8[%c0_29, %c0_30] : memref<256x128xf32, #tpu.memory_space<vmem>>, vector<256x128xf32>
      tpu.vector_store %arg8[%c0_29, %c0_30], %44 {strides = array<i32>} : memref<256x128xf32, #tpu.memory_space<vmem>>, vector<256x128xf32>,
      %cst_31 = arith.constant 0.000000e+00 : f32
      %46 = vector.broadcast %cst_31 : f32 to vector<256x128xf32>
      %c0_32 = arith.constant 0 : index
      %c0_33 = arith.constant 0 : index
      %47 = vector.load %arg9[%c0_32, %c0_33] : memref<256x128xf32, #tpu.memory_space<vmem>>, vector<256x128xf32>
      tpu.vector_store %arg9[%c0_32, %c0_33], %46 {strides = array<i32>} : memref<256x128xf32, #tpu.memory_space<vmem>>, vector<256x128xf32>,
      %cst_34 = arith.constant 0.000000e+00 : f32
      %48 = vector.broadcast %cst_34 : f32 to vector<256x128xf32>
      %c0_35 = arith.constant 0 : index
      %c0_36 = arith.constant 0 : index
      %49 = vector.load %arg10[%c0_35, %c0_36] : memref<256x128xf32, #tpu.memory_space<vmem>>, vector<256x128xf32>
      tpu.vector_store %arg10[%c0_35, %c0_36], %48 {strides = array<i32>} : memref<256x128xf32, #tpu.memory_space<vmem>>, vector<256x128xf32>,
    } else {
    }
    %c0 = arith.constant 0 : index
    %c0_1 = arith.constant 0 : index
    %3 = vector.load %arg7[%c0, %c0_1] : memref<256x128xbf16, #tpu.memory_space<vmem>>, vector<256x128xbf16>
    %c0_2 = arith.constant 0 : index
    %c0_3 = arith.constant 0 : index
    %4 = vector.load %arg4[%c0_2, %c0_3] : memref<256x128xbf16, #tpu.memory_space<vmem>>, vector<256x128xbf16>
    %c0_4 = arith.constant 0 : index
    %c0_5 = arith.constant 0 : index
    %5 = vector.load %arg5[%c0_4, %c0_5] : memref<256x128xbf16, #tpu.memory_space<vmem>>, vector<256x128xbf16>
    %cst = arith.constant dense<0.000000e+00> : vector<256x256xf32>
    %6 = tpu.matmul %3, %4, %cst {dimension_numbers = #tpu.dot_dimension_numbers<[1], [1], [0], [0], [0, 0, 1, 0], [], []>} : vector<256x128xbf16>, vector<256x128xbf16>, vector<256x256xf32> -> vector<256x256xf32>
    %c0_6 = arith.constant 0 : index
    %c0_7 = arith.constant 0 : index
    %7 = vector.load %arg8[%c0_6, %c0_7] : memref<256x128xf32, #tpu.memory_space<vmem>>, vector<256x128xf32>
    %cst_8 = arith.constant dense<0xFF800000> : vector<256xf32>
    %8 = vector.multi_reduction <maximumf>, %6, %cst_8 [1] : vector<256x256xf32> to vector<256xf32>
    %9 = vector.shape_cast %8 : vector<256xf32> to vector<256x1xf32>
    %10 = vector.broadcast %9 : vector<256x1xf32> to vector<256x128xf32>
    %11 = arith.maximumf %7, %10 : vector<256x128xf32>
    %12 = vector.extract_strided_slice %11 {offsets = [0, 0], sizes = [256, 1], strides = [1, 1]} : vector<256x128xf32> to vector<256x1xf32>
    %13 = vector.extract_strided_slice %7 {offsets = [0, 0], sizes = [256, 1], strides = [1, 1]} : vector<256x128xf32> to vector<256x1xf32>
    %14 = arith.subf %13, %12 : vector<256x1xf32>
    %15 = math.exp2 %14 : vector<256x1xf32>
    %16 = vector.broadcast %12 : vector<256x1xf32> to vector<256x256xf32>
    %17 = arith.subf %6, %16 : vector<256x256xf32>
    %18 = math.exp2 %17 : vector<256x256xf32>
    %c0_9 = arith.constant 0 : index
    %c0_10 = arith.constant 0 : index
    %19 = vector.load %arg9[%c0_9, %c0_10] : memref<256x128xf32, #tpu.memory_space<vmem>>, vector<256x128xf32>
    %20 = vector.broadcast %15 : vector<256x1xf32> to vector<256x128xf32>
    %21 = arith.mulf %20, %19 : vector<256x128xf32>
    %cst_11 = arith.constant dense<0.000000e+00> : vector<256xf32>
    %22 = vector.multi_reduction <add>, %18, %cst_11 [1] : vector<256x256xf32> to vector<256xf32>
    %23 = vector.shape_cast %22 : vector<256xf32> to vector<256x1xf32>
    %24 = vector.broadcast %23 : vector<256x1xf32> to vector<256x128xf32>
    %25 = arith.addf %21, %24 : vector<256x128xf32>
    %c0_12 = arith.constant 0 : index
    %c0_13 = arith.constant 0 : index
    %26 = vector.load %arg9[%c0_12, %c0_13] : memref<256x128xf32, #tpu.memory_space<vmem>>, vector<256x128xf32>
    tpu.vector_store %arg9[%c0_12, %c0_13], %25 {strides = array<i32>} : memref<256x128xf32, #tpu.memory_space<vmem>>, vector<256x128xf32>,
    %c0_14 = arith.constant 0 : index
    %c0_15 = arith.constant 0 : index
    %27 = vector.load %arg10[%c0_14, %c0_15] : memref<256x128xf32, #tpu.memory_space<vmem>>, vector<256x128xf32>
    %28 = vector.broadcast %15 : vector<256x1xf32> to vector<256x128xf32>
    %29 = arith.mulf %28, %27 : vector<256x128xf32>
    %30 = arith.truncf %18 : vector<256x256xf32> to vector<256x256xbf16>
    %cst_16 = arith.constant dense<0.000000e+00> : vector<256x128xf32>
    %31 = tpu.matmul %30, %5, %cst_16 {dimension_numbers = #tpu.dot_dimension_numbers<[1], [0], [0], [1], [0, 0, 1, 1], [], []>} : vector<256x256xbf16>, vector<256x128xbf16>, vector<256x128xf32> -> vector<256x128xf32>
    %32 = arith.addf %29, %31 : vector<256x128xf32>
    %c0_17 = arith.constant 0 : index
    %c0_18 = arith.constant 0 : index
    %33 = vector.load %arg10[%c0_17, %c0_18] : memref<256x128xf32, #tpu.memory_space<vmem>>, vector<256x128xf32>
    tpu.vector_store %arg10[%c0_17, %c0_18], %32 {strides = array<i32>} : memref<256x128xf32, #tpu.memory_space<vmem>>, vector<256x128xf32>,
    %c0_19 = arith.constant 0 : index
    %c0_20 = arith.constant 0 : index
    %34 = vector.load %arg8[%c0_19, %c0_20] : memref<256x128xf32, #tpu.memory_space<vmem>>, vector<256x128xf32>
    tpu.vector_store %arg8[%c0_19, %c0_20], %11 {strides = array<i32>} : memref<256x128xf32, #tpu.memory_space<vmem>>, vector<256x128xf32>,
    %c0_i32_21 = arith.constant 0 : i32
    %35 = arith.cmpi eq, %arg2, %c0_i32_21 : i32
    %36 = arith.extui %35 : i1 to i32
    %c0_i32_22 = arith.constant 0 : i32
    %37 = arith.cmpi ne, %36, %c0_i32_22 : i32
    scf.if %37 {
      %c0_23 = arith.constant 0 : index
      %c0_24 = arith.constant 0 : index
      %38 = vector.load %arg9[%c0_23, %c0_24] : memref<256x128xf32, #tpu.memory_space<vmem>>, vector<256x128xf32>
      %39 = tpu.reciprocal %38 {approx = true} : vector<256x128xf32> -> vector<256x128xf32>
      %c0_25 = arith.constant 0 : index
      %c0_26 = arith.constant 0 : index
      %40 = vector.load %arg10[%c0_25, %c0_26] : memref<256x128xf32, #tpu.memory_space<vmem>>, vector<256x128xf32>
      %41 = arith.mulf %40, %39 : vector<256x128xf32>
      %42 = arith.truncf %41 : vector<256x128xf32> to vector<256x128xbf16>
      %c0_27 = arith.constant 0 : index
      %c0_28 = arith.constant 0 : index
      %43 = vector.load %arg6[%c0_27, %c0_28] : memref<256x128xbf16, #tpu.memory_space<vmem>>, vector<256x128xbf16>
      tpu.vector_store %arg6[%c0_27, %c0_28], %42 {strides = array<i32>} : memref<256x128xbf16, #tpu.memory_space<vmem>>, vector<256x128xbf16>,
    } else {
    }
    return
  }
  func.func @transform_0(%arg0: i32, %arg1: i32, %arg2: i32) -> (i32, i32) {
    %c0_i32 = arith.constant 0 : i32
    return %arg1, %arg0 : i32, i32
  }
  func.func @transform_1(%arg0: i32, %arg1: i32, %arg2: i32) -> (i32, i32) {
    %c0_i32 = arith.constant 0 : i32
    return %arg2, %arg0 : i32, i32
  }
  func.func @transform_2(%arg0: i32, %arg1: i32, %arg2: i32) -> (i32, i32) {
    %c0_i32 = arith.constant 0 : i32
    return %arg2, %arg0 : i32, i32
  }
  func.func @transform_3(%arg0: i32, %arg1: i32, %arg2: i32) -> (i32, i32) {
    %c0_i32 = arith.constant 0 : i32
    return %arg1, %arg0 : i32, i32
  }
}

</mosaic_0001>

<llo_original>
// kernel: tpu_custom_call.1
$region0: #{tpu_custom_call.1}
  #allocation0 [shape = 'u32[]', space=smem, size = 0x4, offset = 0x4, fixed_abs, tag = 'smem constant byte address 0x4 - core index']
  #allocation1 [shape = 'u32[144,128]{1,0:T(1,128)}', space=vmem, size = 0x12000, scoped, tag = 'internal scratch']
  #allocation2 [shape = 'bf16[256,128]{1,0:T(16,128)(2,1)}', space=vmem, size = 0x10000, scoped, tag = 'scratch operand']
  #allocation3 [shape = 'f32[256,128]{1,0:T(8,128)}', space=vmem, size = 0x20000, scoped, tag = 'scratch operand']
  #allocation4 [shape = 'f32[256,128]{1,0:T(8,128)}', space=vmem, size = 0x20000, scoped, tag = 'scratch operand']
  #allocation5 [shape = 'f32[256,128]{1,0:T(8,128)}', space=vmem, size = 0x20000, scoped, tag = 'scratch operand']
  %s0 = inlined_call_operand.hbm [shape: bf16[256,512], index: 0, kind: input, shape index: {}]
  %s1 = inlined_call_operand.hbm [shape: bf16[256,512], index: 1, kind: input, shape index: {}]
  %s2 = inlined_call_operand.hbm [shape: bf16[256,512], index: 2, kind: input, shape index: {}]
  %s3 = inlined_call_operand.hbm [shape: bf16[256,512], index: 3, kind: output, shape index: {}]
  %s4 = sld [smem:[#allocation0]]
  $region65: #{tpu_custom_call.1} parent=0
    _
  %s6 = ssub.s32 1, %s4
  %s7 = scalar_select 0, %s6, %s4
  $region1: #{tpu_custom_call.1} parent=0
    #allocation6 [shape = 'u8[131072]{0}', space=vmem, size = 0x20000, scoped, tag = 'input window, operand 0']
    #allocation7 [shape = 's32[2]{0}', space=sflag, size = 0x8, scoped, tag = 'scoped memory for tpu_custom_call.1']
    #allocation8 [shape = 's32[2]{0}', space=sflag, size = 0x8, scoped, tag = 'scoped memory for tpu_custom_call.1']
    #allocation9 [shape = 'u8[131072]{0}', space=vmem, size = 0x20000, scoped, tag = 'input window, operand 1']
    #allocation10 [shape = 's32[2]{0}', space=sflag, size = 0x8, scoped, tag = 'scoped memory for tpu_custom_call.1']
    #allocation11 [shape = 'u8[131072]{0}', space=vmem, size = 0x20000, scoped, tag = 'input window, operand 2']
    #allocation12 [shape = 'u8[131072]{0}', space=vmem, size = 0x20000, scoped, tag = 'output window, operand 0']
    %8 = vsyncpa [#allocation7], 0
    %s9 = scalar_lea.sflag [#allocation7], 1
    %10 = vsyncpa %s9, 0
    %11 = vsyncpa [#allocation10], 0
    %s12 = scalar_lea.sflag [#allocation10], 1
    %13 = vsyncpa %s12, 0
    %14 = vsyncpa [#allocation8], 0
    %s15 = scalar_lea.sflag [#allocation8], 1
    %16 = vsyncpa %s15, 0
    loop: start=0, step=1, limit=6
    $region2: #{tpu_custom_call.1} parent=1 // loop_pre_header
      _
    $region3: #{tpu_custom_call.1} parent=1 // loop_header
      %s18 = sphi 0, %s22
      %p19 = scmp.ge.s32.totalorder %s18, 6
      %s25 = sphi 0, %s44
      %s26 = sphi 0, %s40
      %s27 = sphi 0, %s36
      %s28 = sphi 0, %s25
      %s29 = sphi 0, %s26
      %s30 = sphi 0, %s27
      %s31 = sphi 0, %s28
      %s32 = sphi 0, %s29
      %s33 = sphi 0, %s30
      %s49 = sphi 0, %s51
      %s52 = sphi 0, %s49
      %s53 = sphi 0, %s52
      %s69 = sphi 0, %s53
      %s77 = sphi 0, %s79
      %s80 = sphi 0, %s77
      %s81 = sphi 0, %s80
      %s97 = sphi 0, %s81
      %s105 = sphi 0, %s107
      %s108 = sphi 0, %s105
      %s109 = sphi 0, %s108
      %s125 = sphi 0, %s109
      %s133 = sphi 0, %s135
      %s136 = sphi 0, %s133
      %s137 = sphi 0, %s136
      %s153 = sphi 0, %s137
    $region4: #{tpu_custom_call.1} parent=1 // loop_header_branch
      %21 = sbr.rel (%p19) target = $region8
    $region5: #{tpu_custom_call.1} parent=1 // loop_body
      %s23 = ssub.s32 %s18, 1
      %s24 = ssub.s32 %s18, 2
      %s34 = sadd.s32 1, %s27
      %p35 = scmp.ge.s32.totalorder %s34, 1
      %s36 = scalar_select %p35, 0, %s34
      %s37 = sadd.s32 1, %s26
      %s38 = scalar_select %p35, %s37, %s26
      %p39 = scmp.ge.s32.totalorder %s38, 1
      %s40 = scalar_select %p39, 0, %s38
      %s41 = sadd.s32 1, %s25
      %s42 = scalar_select %p39, %s41, %s25
      %p43 = scmp.ge.s32.totalorder %s42, 4
      %s44 = scalar_select %p43, 0, %s42
      %s45 = ssub.s32 %s26, %s40
      %s46 = ssub.s32 %s25, %s44
      %s47 = sor.u32 %s45, %s46
      %p48 = scmp.eq.s32.totalorder %s47, 0
      %s50 = sadd.s32 %s49, 1
      %s51 = scalar_select %p48, %s49, %s50
      %p54 = pneg %p48
      %p55 = scmp.eq.s32.totalorder %s18, 3
      %p56 = por %p54, %p55
      %p57 = scmp.ne.s32.totalorder %s49, %s52
      %p58 = scmp.eq.s32.totalorder %s18, 0
      %p59 = por %p57, %p58
      %p60 = scmp.ne.s32.totalorder %s49, %s52
      %p61 = scmp.eq.s32.totalorder %s23, 3
      %p62 = por %p60, %p61
      %p63 = scmp.ne.s32.totalorder %s52, %s53
      %p64 = scmp.eq.s32.totalorder %s23, 0
      %p65 = por %p63, %p64
      %p66 = scmp.ne.s32.totalorder %s52, %s53
      %p67 = scmp.eq.s32.totalorder %s24, 3
      %p68 = por %p66, %p67
      %p70 = scmp.ne.s32.totalorder %s53, %s69
      %p71 = scmp.eq.s32.totalorder %s24, 0
      %p72 = por %p70, %p71
      %s73 = ssub.s32 %s27, %s36
      %s74 = ssub.s32 %s25, %s44
      %s75 = sor.u32 %s73, %s74
      %p76 = scmp.eq.s32.totalorder %s75, 0
      %s78 = sadd.s32 %s77, 1
      %s79 = scalar_select %p76, %s77, %s78
      %p82 = pneg %p76
      %p83 = scmp.eq.s32.totalorder %s18, 3
      %p84 = por %p82, %p83
      %p85 = scmp.ne.s32.totalorder %s77, %s80
      %p86 = scmp.eq.s32.totalorder %s18, 0
      %p87 = por %p85, %p86
      %p88 = scmp.ne.s32.totalorder %s77, %s80
      %p89 = scmp.eq.s32.totalorder %s23, 3
      %p90 = por %p88, %p89
      %p91 = scmp.ne.s32.totalorder %s80, %s81
      %p92 = scmp.eq.s32.totalorder %s23, 0
      %p93 = por %p91, %p92
      %p94 = scmp.ne.s32.totalorder %s80, %s81
      %p95 = scmp.eq.s32.totalorder %s24, 3
      %p96 = por %p94, %p95
      %p98 = scmp.ne.s32.totalorder %s81, %s97
      %p99 = scmp.eq.s32.totalorder %s24, 0
      %p100 = por %p98, %p99
      %s101 = ssub.s32 %s27, %s36
      %s102 = ssub.s32 %s25, %s44
      %s103 = sor.u32 %s101, %s102
      %p104 = scmp.eq.s32.totalorder %s103, 0
      %s106 = sadd.s32 %s105, 1
      %s107 = scalar_select %p104, %s105, %s106
      %p110 = pneg %p104
      %p111 = scmp.eq.s32.totalorder %s18, 3
      %p112 = por %p110, %p111
      %p113 = scmp.ne.s32.totalorder %s105, %s108
      %p114 = scmp.eq.s32.totalorder %s18, 0
      %p115 = por %p113, %p114
      %p116 = scmp.ne.s32.totalorder %s105, %s108
      %p117 = scmp.eq.s32.totalorder %s23, 3
      %p118 = por %p116, %p117
      %p119 = scmp.ne.s32.totalorder %s108, %s109
      %p120 = scmp.eq.s32.totalorder %s23, 0
      %p121 = por %p119, %p120
      %p122 = scmp.ne.s32.totalorder %s108, %s109
      %p123 = scmp.eq.s32.totalorder %s24, 3
      %p124 = por %p122, %p123
      %p126 = scmp.ne.s32.totalorder %s109, %s125
      %p127 = scmp.eq.s32.totalorder %s24, 0
      %p128 = por %p126, %p127
      %s129 = ssub.s32 %s26, %s40
      %s130 = ssub.s32 %s25, %s44
      %s131 = sor.u32 %s129, %s130
      %p132 = scmp.eq.s32.totalorder %s131, 0
      %s134 = sadd.s32 %s133, 1
      %s135 = scalar_select %p132, %s133, %s134
      %p138 = pneg %p132
      %p139 = scmp.eq.s32.totalorder %s18, 3
      %p140 = por %p138, %p139
      %p141 = scmp.ne.s32.totalorder %s133, %s136
      %p142 = scmp.eq.s32.totalorder %s18, 0
      %p143 = por %p141, %p142
      %p144 = scmp.ne.s32.totalorder %s133, %s136
      %p145 = scmp.eq.s32.totalorder %s23, 3
      %p146 = por %p144, %p145
      %p147 = scmp.ne.s32.totalorder %s136, %s137
      %p148 = scmp.eq.s32.totalorder %s23, 0
      %p149 = por %p147, %p148
      %p150 = scmp.ne.s32.totalorder %s136, %s137
      %p151 = scmp.eq.s32.totalorder %s24, 3
      %p152 = por %p150, %p151
      %p154 = scmp.ne.s32.totalorder %s137, %s153
      %p155 = scmp.eq.s32.totalorder %s24, 0
      %p156 = por %p154, %p155
      %p157 = scmp.le.s32.totalorder 1, %s18
      %p158 = scmp.lt.s32.totalorder %s18, 5
      %p159 = pnand %p157, %p158
      %p160 = pneg %p159
      // Predicated region
      $region9: #{tpu_custom_call.1} parent=5 // pred_check
        _
      $region10: #{tpu_custom_call.1} parent=5 // pred_check_branch
        %162 = sbr.rel (%p159) target = $region12
      $region11: #{tpu_custom_call.1} parent=5 // pred_region
        %s163 = ssub.s32 %s18, 1
      $region12: #{tpu_custom_call.1} parent=5 // pred_fallthru
        _
      %p164 = scmp.lt.s32.totalorder %s18, 4
      // Predicated region
      $region13: #{tpu_custom_call.1} parent=5 // pred_check
        %p165 = pneg %p164
      $region14: #{tpu_custom_call.1} parent=5 // pred_check_branch
        %167 = sbr.rel (%p165) target = $region16
      $region15: #{tpu_custom_call.1} parent=5 // pred_region
        // Predicated region
        $region17: #{tpu_custom_call.1} parent=15 // pred_check
          %p168 = pneg %p59
        $region18: #{tpu_custom_call.1} parent=15 // pred_check_branch
          %170 = sbr.rel (%p168) target = $region20
        $region19: #{tpu_custom_call.1} parent=15 // pred_region
          %s171 = sand.u32 %s49, 1
          %s172 = scalar_lea.sflag [#allocation7], %s171
          %s173 = sand.u32 %s49, 1
          %s174 = smul.addr %s173, 128
          %s175 = scalar_lea.vmem [#allocation6], %s174
          %s176 = smul.u32 32, %s26
          %s178 = ssub.s32 2048, 2048
          %179 = vsyncadd %s172, %s178
          %s180 = smul.addr %s176, 4
          %s181 = sadd.s32 %s25, %s180
          %s182 = smul.addr %s181, 64
          %s183 = scalar_lea.hbm %s0, %s182
          %s184 = sshll.u32 %s175, 4
          %s185 = int_to_ptr.vmem [resolvable:$true] %s184
          %190 = dma.hbm_to_vmem [thread:$0]  %s183, 2048, %s185, %s172, 256, 64, 4
        $region20: #{tpu_custom_call.1} parent=15 // pred_fallthru
          _
        // Predicated region
        $region21: #{tpu_custom_call.1} parent=15 // pred_check
          %p191 = pneg %p87
        $region22: #{tpu_custom_call.1} parent=15 // pred_check_branch
          %193 = sbr.rel (%p191) target = $region24
        $region23: #{tpu_custom_call.1} parent=15 // pred_region
          %s194 = sand.u32 %s18, 1
          %s195 = scalar_lea.sflag [#allocation10], %s194
          %s196 = sand.u32 %s77, 1
          %s197 = smul.addr %s196, 128
          %s198 = scalar_lea.vmem [#allocation9], %s197
          %s199 = smul.u32 32, %s27
          %s201 = ssub.s32 2048, 2048
          %202 = vsyncadd %s195, %s201
          %s203 = smul.addr %s199, 4
          %s204 = sadd.s32 %s25, %s203
          %s205 = smul.addr %s204, 64
          %s206 = scalar_lea.hbm %s1, %s205
          %s207 = sshll.u32 %s198, 4
          %s208 = int_to_ptr.vmem [resolvable:$true] %s207
          %213 = dma.hbm_to_vmem [thread:$0]  %s206, 2048, %s208, %s195, 256, 64, 4
        $region24: #{tpu_custom_call.1} parent=15 // pred_fallthru
          _
        // Predicated region
        $region25: #{tpu_custom_call.1} parent=15 // pred_check
          %p214 = pneg %p115
        $region26: #{tpu_custom_call.1} parent=15 // pred_check_branch
          %216 = sbr.rel (%p214) target = $region28
        $region27: #{tpu_custom_call.1} parent=15 // pred_region
          %s217 = sand.u32 %s18, 1
          %s218 = scalar_lea.sflag [#allocation10], %s217
          %s219 = sand.u32 %s105, 1
          %s220 = smul.addr %s219, 128
          %s221 = scalar_lea.vmem [#allocation11], %s220
          %s222 = smul.u32 32, %s27
          %s224 = ssub.s32 2048, 2048
          %225 = vsyncadd %s218, %s224
          %s226 = smul.addr %s222, 4
          %s227 = sadd.s32 %s25, %s226
          %s228 = smul.addr %s227, 64
          %s229 = scalar_lea.hbm %s2, %s228
          %s230 = sshll.u32 %s221, 4
          %s231 = int_to_ptr.vmem [resolvable:$true] %s230
          %236 = dma.hbm_to_vmem [thread:$0]  %s229, 2048, %s231, %s218, 256, 64, 4
        $region28: #{tpu_custom_call.1} parent=15 // pred_fallthru
          _
      $region16: #{tpu_custom_call.1} parent=5 // pred_fallthru
        _
      %p237 = scmp.le.s32.totalorder 1, %s18
      %p238 = scmp.lt.s32.totalorder %s18, 5
      %p239 = pnand %p237, %p238
      %p240 = pneg %p239
      // Predicated region
      $region29: #{tpu_custom_call.1} parent=5 // pred_check
        _
      $region30: #{tpu_custom_call.1} parent=5 // pred_check_branch
        %242 = sbr.rel (%p239) target = $region32
      $region31: #{tpu_custom_call.1} parent=5 // pred_region
        %s243 = ssub.s32 %s18, 1
        %s244 = sand.u32 %s52, 1
        %s245 = scalar_lea.sflag [#allocation7], %s244
        %s246 = sand.u32 %s52, 1
        %s247 = smul.addr %s246, 128
        %s248 = scalar_lea.vmem [#allocation6], %s247
        // Predicated region
        $region33: #{tpu_custom_call.1} parent=31 // pred_check
          %p249 = pneg %p65
        $region34: #{tpu_custom_call.1} parent=31 // pred_check_branch
          %251 = sbr.rel (%p249) target = $region36
        $region35: #{tpu_custom_call.1} parent=31 // pred_region
          %252 = dma.done %s245, 2048
        $region36: #{tpu_custom_call.1} parent=31 // pred_fallthru
          _
        %s253 = sand.u32 %s23, 1
        %s254 = scalar_lea.sflag [#allocation10], %s253
        %s255 = sand.u32 %s80, 1
        %s256 = smul.addr %s255, 128
        %s257 = scalar_lea.vmem [#allocation9], %s256
        // Predicated region
        $region37: #{tpu_custom_call.1} parent=31 // pred_check
          %p258 = pneg %p93
        $region38: #{tpu_custom_call.1} parent=31 // pred_check_branch
          %260 = sbr.rel (%p258) target = $region40
        $region39: #{tpu_custom_call.1} parent=31 // pred_region
          %261 = dma.done %s254, 2048
        $region40: #{tpu_custom_call.1} parent=31 // pred_fallthru
          _
        %s262 = sand.u32 %s23, 1
        %s263 = scalar_lea.sflag [#allocation10], %s262
        %s264 = sand.u32 %s108, 1
        %s265 = smul.addr %s264, 128
        %s266 = scalar_lea.vmem [#allocation11], %s265
        // Predicated region
        $region41: #{tpu_custom_call.1} parent=31 // pred_check
          %p267 = pneg %p121
        $region42: #{tpu_custom_call.1} parent=31 // pred_check_branch
          %269 = sbr.rel (%p267) target = $region44
        $region43: #{tpu_custom_call.1} parent=31 // pred_region
          %270 = dma.done %s263, 2048
        $region44: #{tpu_custom_call.1} parent=31 // pred_fallthru
          _
        %s271 = sand.u32 %s52, 1
        %s272 = scalar_lea.sflag [#allocation7], %s271
        %s273 = sand.u32 %s52, 1
        %s274 = smul.addr %s273, 128
        %s275 = scalar_lea.vmem [#allocation6], %s274
        %p276 = pneg %p65
        %p277 = pneg %p62
        %s278 = sand.u32 %s23, 1
        %s279 = scalar_lea.sflag [#allocation10], %s278
        %s280 = sand.u32 %s80, 1
        %s281 = smul.addr %s280, 128
        %s282 = scalar_lea.vmem [#allocation9], %s281
        %p283 = pneg %p93
        %p284 = pneg %p90
        %s285 = sand.u32 %s23, 1
        %s286 = scalar_lea.sflag [#allocation10], %s285
        %s287 = sand.u32 %s108, 1
        %s288 = smul.addr %s287, 128
        %s289 = scalar_lea.vmem [#allocation11], %s288
        %p290 = pneg %p121
        %p291 = pneg %p118
        %p292 = pneg %p149
        %p293 = pneg %p146
        %s294 = sand.u32 %s136, 1
        %s295 = scalar_lea.sflag [#allocation8], %s294
        %s296 = sand.u32 %s136, 1
        %s297 = smul.addr %s296, 128
        %s298 = scalar_lea.vmem [#allocation12], %s297
        %s299 = smul.u32 32, %s29
        %s300 = smul.u32 32, %s30
        %s301 = smul.u32 32, %s30
        %s302 = smul.u32 32, %s29
        %p304 = scmp.eq.s32.totalorder %s30, 0
        // Predicated region
        $region45: #{tpu_custom_call.1} parent=31 // pred_check
          %p305 = pneg %p304
        $region46: #{tpu_custom_call.1} parent=31 // pred_check_branch
          %307 = sbr.rel (%p305) target = $region48
        $region47: #{tpu_custom_call.1} parent=31 // pred_region
          %v308 = vld [vmem:[%s248] sm:$0xf]
          %v309 = vld [vmem:[%s248 + $0x4] sm:$0xf]
          %v310 = vld [vmem:[%s248 + $0x8] sm:$0xf]
          %v311 = vld [vmem:[%s248 + $0xc] sm:$0xf]
          %v312 = vld [vmem:[%s248 + $0x10] sm:$0xf]
          %v313 = vld [vmem:[%s248 + $0x14] sm:$0xf]
          %v314 = vld [vmem:[%s248 + $0x18] sm:$0xf]
          %v315 = vld [vmem:[%s248 + $0x1c] sm:$0xf]
          %v316 = vld [vmem:[%s248 + $0x20] sm:$0xf]
          %v317 = vld [vmem:[%s248 + $0x24] sm:$0xf]
          %v318 = vld [vmem:[%s248 + $0x28] sm:$0xf]
          %v319 = vld [vmem:[%s248 + $0x2c] sm:$0xf]
          %v320 = vld [vmem:[%s248 + $0x30] sm:$0xf]
          %v321 = vld [vmem:[%s248 + $0x34] sm:$0xf]
          %v322 = vld [vmem:[%s248 + $0x38] sm:$0xf]
          %v323 = vld [vmem:[%s248 + $0x3c] sm:$0xf]
          %v324 = vld [vmem:[%s248 + $0x40] sm:$0xf]
          %v325 = vld [vmem:[%s248 + $0x44] sm:$0xf]
          %v326 = vld [vmem:[%s248 + $0x48] sm:$0xf]
          %v327 = vld [vmem:[%s248 + $0x4c] sm:$0xf]
          %v328 = vld [vmem:[%s248 + $0x50] sm:$0xf]
          %v329 = vld [vmem:[%s248 + $0x54] sm:$0xf]
          %v330 = vld [vmem:[%s248 + $0x58] sm:$0xf]
          %v331 = vld [vmem:[%s248 + $0x5c] sm:$0xf]
          %v332 = vld [vmem:[%s248 + $0x60] sm:$0xf]
          %v333 = vld [vmem:[%s248 + $0x64] sm:$0xf]
          %v334 = vld [vmem:[%s248 + $0x68] sm:$0xf]
          %v335 = vld [vmem:[%s248 + $0x6c] sm:$0xf]
          %v336 = vld [vmem:[%s248 + $0x70] sm:$0xf]
          %v337 = vld [vmem:[%s248 + $0x74] sm:$0xf]
          %v338 = vld [vmem:[%s248 + $0x78] sm:$0xf]
          %v339 = vld [vmem:[%s248 + $0x7c] sm:$0xf]
          %v340 = vunpack.c.l.bf16 %v308
          %v341 = vunpack.c.l.bf16 %v309
          %v342 = vunpack.c.l.bf16 %v310
          %v343 = vunpack.c.l.bf16 %v311
          %v344 = vunpack.c.l.bf16 %v312
          %v345 = vunpack.c.l.bf16 %v313
          %v346 = vunpack.c.l.bf16 %v314
          %v347 = vunpack.c.l.bf16 %v315
          %v348 = vunpack.c.l.bf16 %v316
          %v349 = vunpack.c.l.bf16 %v317
          %v350 = vunpack.c.l.bf16 %v318
          %v351 = vunpack.c.l.bf16 %v319
          %v352 = vunpack.c.l.bf16 %v320
          %v353 = vunpack.c.l.bf16 %v321
          %v354 = vunpack.c.l.bf16 %v322
          %v355 = vunpack.c.l.bf16 %v323
          %v356 = vunpack.c.l.bf16 %v324
          %v357 = vunpack.c.l.bf16 %v325
          %v358 = vunpack.c.l.bf16 %v326
          %v359 = vunpack.c.l.bf16 %v327
          %v360 = vunpack.c.l.bf16 %v328
          %v361 = vunpack.c.l.bf16 %v329
          %v362 = vunpack.c.l.bf16 %v330
          %v363 = vunpack.c.l.bf16 %v331
          %v364 = vunpack.c.l.bf16 %v332
          %v365 = vunpack.c.l.bf16 %v333
          %v366 = vunpack.c.l.bf16 %v334
          %v367 = vunpack.c.l.bf16 %v335
          %v368 = vunpack.c.l.bf16 %v336
          %v369 = vunpack.c.l.bf16 %v337
          %v370 = vunpack.c.l.bf16 %v338
          %v371 = vunpack.c.l.bf16 %v339
          %v372 = vmul.f32 %v340, 0.12751743
          %v373 = vmul.f32 %v341, 0.12751743
          %v374 = vmul.f32 %v342, 0.12751743
          %v375 = vmul.f32 %v343, 0.12751743
          %v376 = vmul.f32 %v344, 0.12751743
          %v377 = vmul.f32 %v345, 0.12751743
          %v378 = vmul.f32 %v346, 0.12751743
          %v379 = vmul.f32 %v347, 0.12751743
          %v380 = vmul.f32 %v348, 0.12751743
          %v381 = vmul.f32 %v349, 0.12751743
          %v382 = vmul.f32 %v350, 0.12751743
          %v383 = vmul.f32 %v351, 0.12751743
          %v384 = vmul.f32 %v352, 0.12751743
          %v385 = vmul.f32 %v353, 0.12751743
          %v386 = vmul.f32 %v354, 0.12751743
          %v387 = vmul.f32 %v355, 0.12751743
          %v388 = vmul.f32 %v356, 0.12751743
          %v389 = vmul.f32 %v357, 0.12751743
          %v390 = vmul.f32 %v358, 0.12751743
          %v391 = vmul.f32 %v359, 0.12751743
          %v392 = vmul.f32 %v360, 0.12751743
          %v393 = vmul.f32 %v361, 0.12751743
          %v394 = vmul.f32 %v362, 0.12751743
          %v395 = vmul.f32 %v363, 0.12751743
          %v396 = vmul.f32 %v364, 0.12751743
          %v397 = vmul.f32 %v365, 0.12751743
          %v398 = vmul.f32 %v366, 0.12751743
          %v399 = vmul.f32 %v367, 0.12751743
          %v400 = vmul.f32 %v368, 0.12751743
          %v401 = vmul.f32 %v369, 0.12751743
          %v402 = vmul.f32 %v370, 0.12751743
          %v403 = vmul.f32 %v371, 0.12751743
          %v404 = vpack.c.bf16 %v373, %v372
          %v405 = vpack.c.bf16 %v375, %v374
          %v406 = vpack.c.bf16 %v377, %v376
          %v407 = vpack.c.bf16 %v379, %v378
          %v408 = vpack.c.bf16 %v381, %v380
          %v409 = vpack.c.bf16 %v383, %v382
          %v410 = vpack.c.bf16 %v385, %v384
          %v411 = vpack.c.bf16 %v387, %v386
          %v412 = vpack.c.bf16 %v389, %v388
          %v413 = vpack.c.bf16 %v391, %v390
          %v414 = vpack.c.bf16 %v393, %v392
          %v415 = vpack.c.bf16 %v395, %v394
          %v416 = vpack.c.bf16 %v397, %v396
          %v417 = vpack.c.bf16 %v399, %v398
          %v418 = vpack.c.bf16 %v401, %v400
          %v419 = vpack.c.bf16 %v403, %v402
          %420 = vst [vmem:[#allocation2] sm:$0xff] %v404
          %421 = vst [vmem:[#allocation2 + $0x8] sm:$0xff] %v405
          %422 = vst [vmem:[#allocation2 + $0x10] sm:$0xff] %v406
          %423 = vst [vmem:[#allocation2 + $0x18] sm:$0xff] %v407
          %424 = vst [vmem:[#allocation2 + $0x20] sm:$0xff] %v408
          %425 = vst [vmem:[#allocation2 + $0x28] sm:$0xff] %v409
          %426 = vst [vmem:[#allocation2 + $0x30] sm:$0xff] %v410
          %427 = vst [vmem:[#allocation2 + $0x38] sm:$0xff] %v411
          %428 = vst [vmem:[#allocation2 + $0x40] sm:$0xff] %v412
          %429 = vst [vmem:[#allocation2 + $0x48] sm:$0xff] %v413
          %430 = vst [vmem:[#allocation2 + $0x50] sm:$0xff] %v414
          %431 = vst [vmem:[#allocation2 + $0x58] sm:$0xff] %v415
          %432 = vst [vmem:[#allocation2 + $0x60] sm:$0xff] %v416
          %433 = vst [vmem:[#allocation2 + $0x68] sm:$0xff] %v417
          %434 = vst [vmem:[#allocation2 + $0x70] sm:$0xff] %v418
          %435 = vst [vmem:[#allocation2 + $0x78] sm:$0xff] %v419
          %436 = vst [vmem:[#allocation3] sm:$0xff] -inf
          %437 = vst [vmem:[#allocation3 + $0x8] sm:$0xff] -inf
          %438 = vst [vmem:[#allocation3 + $0x10] sm:$0xff] -inf
          %439 = vst [vmem:[#allocation3 + $0x18] sm:$0xff] -inf
          %440 = vst [vmem:[#allocation3 + $0x20] sm:$0xff] -inf
          %441 = vst [vmem:[#allocation3 + $0x28] sm:$0xff] -inf
          %442 = vst [vmem:[#allocation3 + $0x30] sm:$0xff] -inf
          %443 = vst [vmem:[#allocation3 + $0x38] sm:$0xff] -inf
          %444 = vst [vmem:[#allocation3 + $0x40] sm:$0xff] -inf
          %445 = vst [vmem:[#allocation3 + $0x48] sm:$0xff] -inf
          %446 = vst [vmem:[#allocation3 + $0x50] sm:$0xff] -inf
          %447 = vst [vmem:[#allocation3 + $0x58] sm:$0xff] -inf
          %448 = vst [vmem:[#allocation3 + $0x60] sm:$0xff] -inf
          %449 = vst [vmem:[#allocation3 + $0x68] sm:$0xff] -inf
          %450 = vst [vmem:[#allocation3 + $0x70] sm:$0xff] -inf
          %451 = vst [vmem:[#allocation3 + $0x78] sm:$0xff] -inf
          %452 = vst [vmem:[#allocation3 + $0x80] sm:$0xff] -inf
          %453 = vst [vmem:[#allocation3 + $0x88] sm:$0xff] -inf
          %454 = vst [vmem:[#allocation3 + $0x90] sm:$0xff] -inf
          %455 = vst [vmem:[#allocation3 + $0x98] sm:$0xff] -inf
          %456 = vst [vmem:[#allocation3 + $0xa0] sm:$0xff] -inf
          %457 = vst [vmem:[#allocation3 + $0xa8] sm:$0xff] -inf
          %458 = vst [vmem:[#allocation3 + $0xb0] sm:$0xff] -inf
          %459 = vst [vmem:[#allocation3 + $0xb8] sm:$0xff] -inf
          %460 = vst [vmem:[#allocation3 + $0xc0] sm:$0xff] -inf
          %461 = vst [vmem:[#allocation3 + $0xc8] sm:$0xff] -inf
          %462 = vst [vmem:[#allocation3 + $0xd0] sm:$0xff] -inf
          %463 = vst [vmem:[#allocation3 + $0xd8] sm:$0xff] -inf
          %464 = vst [vmem:[#allocation3 + $0xe0] sm:$0xff] -inf
          %465 = vst [vmem:[#allocation3 + $0xe8] sm:$0xff] -inf
          %466 = vst [vmem:[#allocation3 + $0xf0] sm:$0xff] -inf
          %467 = vst [vmem:[#allocation3 + $0xf8] sm:$0xff] -inf
          %468 = vst [vmem:[#allocation4] sm:$0xff] 0.0
          %469 = vst [vmem:[#allocation4 + $0x8] sm:$0xff] 0.0
          %470 = vst [vmem:[#allocation4 + $0x10] sm:$0xff] 0.0
          %471 = vst [vmem:[#allocation4 + $0x18] sm:$0xff] 0.0
          %472 = vst [vmem:[#allocation4 + $0x20] sm:$0xff] 0.0
          %473 = vst [vmem:[#allocation4 + $0x28] sm:$0xff] 0.0
          %474 = vst [vmem:[#allocation4 + $0x30] sm:$0xff] 0.0
          %475 = vst [vmem:[#allocation4 + $0x38] sm:$0xff] 0.0
          %476 = vst [vmem:[#allocation4 + $0x40] sm:$0xff] 0.0
          %477 = vst [vmem:[#allocation4 + $0x48] sm:$0xff] 0.0
          %478 = vst [vmem:[#allocation4 + $0x50] sm:$0xff] 0.0
          %479 = vst [vmem:[#allocation4 + $0x58] sm:$0xff] 0.0
          %480 = vst [vmem:[#allocation4 + $0x60] sm:$0xff] 0.0
          %481 = vst [vmem:[#allocation4 + $0x68] sm:$0xff] 0.0
          %482 = vst [vmem:[#allocation4 + $0x70] sm:$0xff] 0.0
          %483 = vst [vmem:[#allocation4 + $0x78] sm:$0xff] 0.0
          %484 = vst [vmem:[#allocation4 + $0x80] sm:$0xff] 0.0
          %485 = vst [vmem:[#allocation4 + $0x88] sm:$0xff] 0.0
          %486 = vst [vmem:[#allocation4 + $0x90] sm:$0xff] 0.0
          %487 = vst [vmem:[#allocation4 + $0x98] sm:$0xff] 0.0
          %488 = vst [vmem:[#allocation4 + $0xa0] sm:$0xff] 0.0
          %489 = vst [vmem:[#allocation4 + $0xa8] sm:$0xff] 0.0
          %490 = vst [vmem:[#allocation4 + $0xb0] sm:$0xff] 0.0
          %491 = vst [vmem:[#allocation4 + $0xb8] sm:$0xff] 0.0
          %492 = vst [vmem:[#allocation4 + $0xc0] sm:$0xff] 0.0
          %493 = vst [vmem:[#allocation4 + $0xc8] sm:$0xff] 0.0
          %494 = vst [vmem:[#allocation4 + $0xd0] sm:$0xff] 0.0
          %495 = vst [vmem:[#allocation4 + $0xd8] sm:$0xff] 0.0
          %496 = vst [vmem:[#allocation4 + $0xe0] sm:$0xff] 0.0
          %497 = vst [vmem:[#allocation4 + $0xe8] sm:$0xff] 0.0
          %498 = vst [vmem:[#allocation4 + $0xf0] sm:$0xff] 0.0
          %499 = vst [vmem:[#allocation4 + $0xf8] sm:$0xff] 0.0
          %500 = vst [vmem:[#allocation5] sm:$0xff] 0.0
          %501 = vst [vmem:[#allocation5 + $0x8] sm:$0xff] 0.0
          %502 = vst [vmem:[#allocation5 + $0x10] sm:$0xff] 0.0
          %503 = vst [vmem:[#allocation5 + $0x18] sm:$0xff] 0.0
          %504 = vst [vmem:[#allocation5 + $0x20] sm:$0xff] 0.0
          %505 = vst [vmem:[#allocation5 + $0x28] sm:$0xff] 0.0
          %506 = vst [vmem:[#allocation5 + $0x30] sm:$0xff] 0.0
          %507 = vst [vmem:[#allocation5 + $0x38] sm:$0xff] 0.0
          %508 = vst [vmem:[#allocation5 + $0x40] sm:$0xff] 0.0
          %509 = vst [vmem:[#allocation5 + $0x48] sm:$0xff] 0.0
          %510 = vst [vmem:[#allocation5 + $0x50] sm:$0xff] 0.0
          %511 = vst [vmem:[#allocation5 + $0x58] sm:$0xff] 0.0
          %512 = vst [vmem:[#allocation5 + $0x60] sm:$0xff] 0.0
          %513 = vst [vmem:[#allocation5 + $0x68] sm:$0xff] 0.0
          %514 = vst [vmem:[#allocation5 + $0x70] sm:$0xff] 0.0
          %515 = vst [vmem:[#allocation5 + $0x78] sm:$0xff] 0.0
          %516 = vst [vmem:[#allocation5 + $0x80] sm:$0xff] 0.0
          %517 = vst [vmem:[#allocation5 + $0x88] sm:$0xff] 0.0
          %518 = vst [vmem:[#allocation5 + $0x90] sm:$0xff] 0.0
          %519 = vst [vmem:[#allocation5 + $0x98] sm:$0xff] 0.0
          %520 = vst [vmem:[#allocation5 + $0xa0] sm:$0xff] 0.0
          %521 = vst [vmem:[#allocation5 + $0xa8] sm:$0xff] 0.0
          %522 = vst [vmem:[#allocation5 + $0xb0] sm:$0xff] 0.0
          %523 = vst [vmem:[#allocation5 + $0xb8] sm:$0xff] 0.0
          %524 = vst [vmem:[#allocation5 + $0xc0] sm:$0xff] 0.0
          %525 = vst [vmem:[#allocation5 + $0xc8] sm:$0xff] 0.0
          %526 = vst [vmem:[#allocation5 + $0xd0] sm:$0xff] 0.0
          %527 = vst [vmem:[#allocation5 + $0xd8] sm:$0xff] 0.0
          %528 = vst [vmem:[#allocation5 + $0xe0] sm:$0xff] 0.0
          %529 = vst [vmem:[#allocation5 + $0xe8] sm:$0xff] 0.0
          %530 = vst [vmem:[#allocation5 + $0xf0] sm:$0xff] 0.0
          %531 = vst [vmem:[#allocation5 + $0xf8] sm:$0xff] 0.0
        $region48: #{tpu_custom_call.1} parent=31 // pred_fallthru
          _
        %v532 = vld [vmem:[#allocation2] sm:$0xff]
        %v533 = vld [vmem:[#allocation2 + $0x8] sm:$0xff]
        %v534 = vld [vmem:[#allocation2 + $0x10] sm:$0xff]
        %v535 = vld [vmem:[#allocation2 + $0x18] sm:$0xff]
        %v536 = vld [vmem:[#allocation2 + $0x20] sm:$0xff]
        %v537 = vld [vmem:[#allocation2 + $0x28] sm:$0xff]
        %v538 = vld [vmem:[#allocation2 + $0x30] sm:$0xff]
        %v539 = vld [vmem:[#allocation2 + $0x38] sm:$0xff]
        %v540 = vld [vmem:[#allocation2 + $0x40] sm:$0xff]
        %v541 = vld [vmem:[#allocation2 + $0x48] sm:$0xff]
        %v542 = vld [vmem:[#allocation2 + $0x50] sm:$0xff]
        %v543 = vld [vmem:[#allocation2 + $0x58] sm:$0xff]
        %v544 = vld [vmem:[#allocation2 + $0x60] sm:$0xff]
        %v545 = vld [vmem:[#allocation2 + $0x68] sm:$0xff]
        %v546 = vld [vmem:[#allocation2 + $0x70] sm:$0xff]
        %v547 = vld [vmem:[#allocation2 + $0x78] sm:$0xff]
        %v548 = vld [vmem:[%s257] sm:$0xf]
        %v549 = vld [vmem:[%s257 + $0x4] sm:$0xf]
        %v550 = vld [vmem:[%s257 + $0x8] sm:$0xf]
        %v551 = vld [vmem:[%s257 + $0xc] sm:$0xf]
        %v552 = vld [vmem:[%s257 + $0x10] sm:$0xf]
        %v553 = vld [vmem:[%s257 + $0x14] sm:$0xf]
        %v554 = vld [vmem:[%s257 + $0x18] sm:$0xf]
        %v555 = vld [vmem:[%s257 + $0x1c] sm:$0xf]
        %v556 = vld [vmem:[%s257 + $0x20] sm:$0xf]
        %v557 = vld [vmem:[%s257 + $0x24] sm:$0xf]
        %v558 = vld [vmem:[%s257 + $0x28] sm:$0xf]
        %v559 = vld [vmem:[%s257 + $0x2c] sm:$0xf]
        %v560 = vld [vmem:[%s257 + $0x30] sm:$0xf]
        %v561 = vld [vmem:[%s257 + $0x34] sm:$0xf]
        %v562 = vld [vmem:[%s257 + $0x38] sm:$0xf]
        %v563 = vld [vmem:[%s257 + $0x3c] sm:$0xf]
        %v564 = vld [vmem:[%s257 + $0x40] sm:$0xf]
        %v565 = vld [vmem:[%s257 + $0x44] sm:$0xf]
        %v566 = vld [vmem:[%s257 + $0x48] sm:$0xf]
        %v567 = vld [vmem:[%s257 + $0x4c] sm:$0xf]
        %v568 = vld [vmem:[%s257 + $0x50] sm:$0xf]
        %v569 = vld [vmem:[%s257 + $0x54] sm:$0xf]
        %v570 = vld [vmem:[%s257 + $0x58] sm:$0xf]
        %v571 = vld [vmem:[%s257 + $0x5c] sm:$0xf]
        %v572 = vld [vmem:[%s257 + $0x60] sm:$0xf]
        %v573 = vld [vmem:[%s257 + $0x64] sm:$0xf]
        %v574 = vld [vmem:[%s257 + $0x68] sm:$0xf]
        %v575 = vld [vmem:[%s257 + $0x6c] sm:$0xf]
        %v576 = vld [vmem:[%s257 + $0x70] sm:$0xf]
        %v577 = vld [vmem:[%s257 + $0x74] sm:$0xf]
        %v578 = vld [vmem:[%s257 + $0x78] sm:$0xf]
        %v579 = vld [vmem:[%s257 + $0x7c] sm:$0xf]
        %v580 = vld [vmem:[%s266] sm:$0xf]
        %v581 = vld [vmem:[%s266 + $0x4] sm:$0xf]
        %v582 = vld [vmem:[%s266 + $0x8] sm:$0xf]
        %v583 = vld [vmem:[%s266 + $0xc] sm:$0xf]
        %v584 = vld [vmem:[%s266 + $0x10] sm:$0xf]
        %v585 = vld [vmem:[%s266 + $0x14] sm:$0xf]
        %v586 = vld [vmem:[%s266 + $0x18] sm:$0xf]
        %v587 = vld [vmem:[%s266 + $0x1c] sm:$0xf]
        %v588 = vld [vmem:[%s266 + $0x20] sm:$0xf]
        %v589 = vld [vmem:[%s266 + $0x24] sm:$0xf]
        %v590 = vld [vmem:[%s266 + $0x28] sm:$0xf]
        %v591 = vld [vmem:[%s266 + $0x2c] sm:$0xf]
        %v592 = vld [vmem:[%s266 + $0x30] sm:$0xf]
        %v593 = vld [vmem:[%s266 + $0x34] sm:$0xf]
        %v594 = vld [vmem:[%s266 + $0x38] sm:$0xf]
        %v595 = vld [vmem:[%s266 + $0x3c] sm:$0xf]
        %v596 = vld [vmem:[%s266 + $0x40] sm:$0xf]
        %v597 = vld [vmem:[%s266 + $0x44] sm:$0xf]
        %v598 = vld [vmem:[%s266 + $0x48] sm:$0xf]
        %v599 = vld [vmem:[%s266 + $0x4c] sm:$0xf]
        %v600 = vld [vmem:[%s266 + $0x50] sm:$0xf]
        %v601 = vld [vmem:[%s266 + $0x54] sm:$0xf]
        %v602 = vld [vmem:[%s266 + $0x58] sm:$0xf]
        %v603 = vld [vmem:[%s266 + $0x5c] sm:$0xf]
        %v604 = vld [vmem:[%s266 + $0x60] sm:$0xf]
        %v605 = vld [vmem:[%s266 + $0x64] sm:$0xf]
        %v606 = vld [vmem:[%s266 + $0x68] sm:$0xf]
        %v607 = vld [vmem:[%s266 + $0x6c] sm:$0xf]
        %v608 = vld [vmem:[%s266 + $0x70] sm:$0xf]
        %v609 = vld [vmem:[%s266 + $0x74] sm:$0xf]
        %v610 = vld [vmem:[%s266 + $0x78] sm:$0xf]
        %v611 = vld [vmem:[%s266 + $0x7c] sm:$0xf]
        %v644 = vunpack.c.l.b16 %v548
        %v645 = vunpack.c.l.b16 %v549
        %v646 = vunpack.c.l.b16 %v550
        %v647 = vunpack.c.l.b16 %v551
        %v648 = vunpack.c.l.b16 %v552
        %v649 = vunpack.c.l.b16 %v553
        %v650 = vunpack.c.l.b16 %v554
        %v651 = vunpack.c.l.b16 %v555
        %v652 = vunpack.c.l.b16 %v556
        %v653 = vunpack.c.l.b16 %v557
        %v654 = vunpack.c.l.b16 %v558
        %v655 = vunpack.c.l.b16 %v559
        %v656 = vunpack.c.l.b16 %v560
        %v657 = vunpack.c.l.b16 %v561
        %v658 = vunpack.c.l.b16 %v562
        %v659 = vunpack.c.l.b16 %v563
        %v660 = vunpack.c.l.b16 %v564
        %v661 = vunpack.c.l.b16 %v565
        %v662 = vunpack.c.l.b16 %v566
        %v663 = vunpack.c.l.b16 %v567
        %v664 = vunpack.c.l.b16 %v568
        %v665 = vunpack.c.l.b16 %v569
        %v666 = vunpack.c.l.b16 %v570
        %v667 = vunpack.c.l.b16 %v571
        %v668 = vunpack.c.l.b16 %v572
        %v669 = vunpack.c.l.b16 %v573
        %v670 = vunpack.c.l.b16 %v574
        %v671 = vunpack.c.l.b16 %v575
        %v672 = vunpack.c.l.b16 %v576
        %v673 = vunpack.c.l.b16 %v577
        %v674 = vunpack.c.l.b16 %v578
        %v675 = vunpack.c.l.b16 %v579
        %v676 = vpack.c.b16 %v645, %v644
        %v677 = vpack.c.b16 %v647, %v646
        %v678 = vpack.c.b16 %v649, %v648
        %v679 = vpack.c.b16 %v651, %v650
        %v680 = vpack.c.b16 %v653, %v652
        %v681 = vpack.c.b16 %v655, %v654
        %v682 = vpack.c.b16 %v657, %v656
        %v683 = vpack.c.b16 %v659, %v658
        %v684 = vpack.c.b16 %v661, %v660
        %v685 = vpack.c.b16 %v663, %v662
        %v686 = vpack.c.b16 %v665, %v664
        %v687 = vpack.c.b16 %v667, %v666
        %v688 = vpack.c.b16 %v669, %v668
        %v689 = vpack.c.b16 %v671, %v670
        %v690 = vpack.c.b16 %v673, %v672
        %v691 = vpack.c.b16 %v675, %v674
        %708 = vmatprep.subr.bf16.mxu0 0
        %709 = vmatpush1.bf16.xpose.msra.mxu0 %v676
        %710 = vmatprep.subr.bf16.mxu0 0
        %711 = vmatpush1.bf16.xpose.msra.mxu0 %v677
        %712 = vmatprep.subr.bf16.mxu0 0
        %713 = vmatpush1.bf16.xpose.msra.mxu0 %v678
        %714 = vmatprep.subr.bf16.mxu0 0
        %715 = vmatpush1.bf16.xpose.msra.mxu0 %v679
        %716 = vmatprep.subr.bf16.mxu0 0
        %717 = vmatpush1.bf16.xpose.msra.mxu0 %v680
        %718 = vmatprep.subr.bf16.mxu0 0
        %719 = vmatpush1.bf16.xpose.msra.mxu0 %v681
        %720 = vmatprep.subr.bf16.mxu0 0
        %721 = vmatpush1.bf16.xpose.msra.mxu0 %v682
        %722 = vmatprep.subr.bf16.mxu0 0
        %723 = vmatpush1.bf16.xpose.msra.mxu0 %v683
        %724 = vmatprep.subr.bf16.mxu0 0
        %725 = vmatpush1.bf16.xpose.msra.mxu0 %v684
        %726 = vmatprep.subr.bf16.mxu0 0
        %727 = vmatpush1.bf16.xpose.msra.mxu0 %v685
        %728 = vmatprep.subr.bf16.mxu0 0
        %729 = vmatpush1.bf16.xpose.msra.mxu0 %v686
        %730 = vmatprep.subr.bf16.mxu0 0
        %731 = vmatpush1.bf16.xpose.msra.mxu0 %v687
        %732 = vmatprep.subr.bf16.mxu0 0
        %733 = vmatpush1.bf16.xpose.msra.mxu0 %v688
        %734 = vmatprep.subr.bf16.mxu0 0
        %735 = vmatpush1.bf16.xpose.msra.mxu0 %v689
        %736 = vmatprep.subr.bf16.mxu0 0
        %737 = vmatpush1.bf16.xpose.msra.mxu0 %v690
        %738 = vmatprep.subr.bf16.mxu0 0
        %739 = vmatpush1.bf16.xpose.msra.mxu0 %v691
        %740 = vmatprep.mubr.bf16.mxu0 0
        %741 = vmatmul.mubr.bf16.gmra.mrb[0].mxu0 %v532
        %v742 = vpop.f32.mrb[0].mxu0
        %v743 = vadd.f32 0.0, %v742
        %v744 = vpop.f32.mrb[0].mxu0
        %v745 = vadd.f32 0.0, %v744
        %v746 = vpop.f32.mrb[0].mxu0
        %v747 = vadd.f32 0.0, %v746
        %v748 = vpop.f32.mrb[0].mxu0
        %v749 = vadd.f32 0.0, %v748
        %750 = vmatprep.mubr.bf16.mxu0 0
        %751 = vmatmul.mubr.bf16.gmra.mrb[0].mxu0 %v533
        %v752 = vpop.f32.mrb[0].mxu0
        %v753 = vadd.f32 0.0, %v752
        %v754 = vpop.f32.mrb[0].mxu0
        %v755 = vadd.f32 0.0, %v754
        %v756 = vpop.f32.mrb[0].mxu0
        %v757 = vadd.f32 0.0, %v756
        %v758 = vpop.f32.mrb[0].mxu0
        %v759 = vadd.f32 0.0, %v758
        %760 = vmatprep.mubr.bf16.mxu0 0
        %761 = vmatmul.mubr.bf16.gmra.mrb[0].mxu0 %v534
        %v762 = vpop.f32.mrb[0].mxu0
        %v763 = vadd.f32 0.0, %v762
        %v764 = vpop.f32.mrb[0].mxu0
        %v765 = vadd.f32 0.0, %v764
        %v766 = vpop.f32.mrb[0].mxu0
        %v767 = vadd.f32 0.0, %v766
        %v768 = vpop.f32.mrb[0].mxu0
        %v769 = vadd.f32 0.0, %v768
        %770 = vmatprep.mubr.bf16.mxu0 0
        %771 = vmatmul.mubr.bf16.gmra.mrb[0].mxu0 %v535
        %v772 = vpop.f32.mrb[0].mxu0
        %v773 = vadd.f32 0.0, %v772
        %v774 = vpop.f32.mrb[0].mxu0
        %v775 = vadd.f32 0.0, %v774
        %v776 = vpop.f32.mrb[0].mxu0
        %v777 = vadd.f32 0.0, %v776
        %v778 = vpop.f32.mrb[0].mxu0
        %v779 = vadd.f32 0.0, %v778
        %780 = vmatprep.mubr.bf16.mxu0 0
        %781 = vmatmul.mubr.bf16.gmra.mrb[0].mxu0 %v536
        %v782 = vpop.f32.mrb[0].mxu0
        %v783 = vadd.f32 0.0, %v782
        %v784 = vpop.f32.mrb[0].mxu0
        %v785 = vadd.f32 0.0, %v784
        %v786 = vpop.f32.mrb[0].mxu0
        %v787 = vadd.f32 0.0, %v786
        %v788 = vpop.f32.mrb[0].mxu0
        %v789 = vadd.f32 0.0, %v788
        %790 = vmatprep.mubr.bf16.mxu0 0
        %791 = vmatmul.mubr.bf16.gmra.mrb[0].mxu0 %v537
        %v792 = vpop.f32.mrb[0].mxu0
        %v793 = vadd.f32 0.0, %v792
        %v794 = vpop.f32.mrb[0].mxu0
        %v795 = vadd.f32 0.0, %v794
        %v796 = vpop.f32.mrb[0].mxu0
        %v797 = vadd.f32 0.0, %v796
        %v798 = vpop.f32.mrb[0].mxu0
        %v799 = vadd.f32 0.0, %v798
        %800 = vmatprep.mubr.bf16.mxu0 0
        %801 = vmatmul.mubr.bf16.gmra.mrb[0].mxu0 %v538
        %v802 = vpop.f32.mrb[0].mxu0
        %v803 = vadd.f32 0.0, %v802
        %v804 = vpop.f32.mrb[0].mxu0
        %v805 = vadd.f32 0.0, %v804
        %v806 = vpop.f32.mrb[0].mxu0
        %v807 = vadd.f32 0.0, %v806
        %v808 = vpop.f32.mrb[0].mxu0
        %v809 = vadd.f32 0.0, %v808
        %810 = vmatprep.mubr.bf16.mxu0 0
        %811 = vmatmul.mubr.bf16.gmra.mrb[0].mxu0 %v539
        %v812 = vpop.f32.mrb[0].mxu0
        %v813 = vadd.f32 0.0, %v812
        %v814 = vpop.f32.mrb[0].mxu0
        %v815 = vadd.f32 0.0, %v814
        %v816 = vpop.f32.mrb[0].mxu0
        %v817 = vadd.f32 0.0, %v816
        %v818 = vpop.f32.mrb[0].mxu0
        %v819 = vadd.f32 0.0, %v818
        %820 = vmatprep.mubr.bf16.mxu0 0
        %821 = vmatmul.mubr.bf16.gmra.mrb[0].mxu0 %v540
        %v822 = vpop.f32.mrb[0].mxu0
        %v823 = vadd.f32 0.0, %v822
        %v824 = vpop.f32.mrb[0].mxu0
        %v825 = vadd.f32 0.0, %v824
        %v826 = vpop.f32.mrb[0].mxu0
        %v827 = vadd.f32 0.0, %v826
        %v828 = vpop.f32.mrb[0].mxu0
        %v829 = vadd.f32 0.0, %v828
        %830 = vmatprep.mubr.bf16.mxu0 0
        %831 = vmatmul.mubr.bf16.gmra.mrb[0].mxu0 %v541
        %v832 = vpop.f32.mrb[0].mxu0
        %v833 = vadd.f32 0.0, %v832
        %v834 = vpop.f32.mrb[0].mxu0
        %v835 = vadd.f32 0.0, %v834
        %v836 = vpop.f32.mrb[0].mxu0
        %v837 = vadd.f32 0.0, %v836
        %v838 = vpop.f32.mrb[0].mxu0
        %v839 = vadd.f32 0.0, %v838
        %840 = vmatprep.mubr.bf16.mxu0 0
        %841 = vmatmul.mubr.bf16.gmra.mrb[0].mxu0 %v542
        %v842 = vpop.f32.mrb[0].mxu0
        %v843 = vadd.f32 0.0, %v842
        %v844 = vpop.f32.mrb[0].mxu0
        %v845 = vadd.f32 0.0, %v844
        %v846 = vpop.f32.mrb[0].mxu0
        %v847 = vadd.f32 0.0, %v846
        %v848 = vpop.f32.mrb[0].mxu0
        %v849 = vadd.f32 0.0, %v848
        %850 = vmatprep.mubr.bf16.mxu0 0
        %851 = vmatmul.mubr.bf16.gmra.mrb[0].mxu0 %v543
        %v852 = vpop.f32.mrb[0].mxu0
        %v853 = vadd.f32 0.0, %v852
        %v854 = vpop.f32.mrb[0].mxu0
        %v855 = vadd.f32 0.0, %v854
        %v856 = vpop.f32.mrb[0].mxu0
        %v857 = vadd.f32 0.0, %v856
        %v858 = vpop.f32.mrb[0].mxu0
        %v859 = vadd.f32 0.0, %v858
        %860 = vmatprep.mubr.bf16.mxu0 0
        %861 = vmatmul.mubr.bf16.gmra.mrb[0].mxu0 %v544
        %v862 = vpop.f32.mrb[0].mxu0
        %v863 = vadd.f32 0.0, %v862
        %v864 = vpop.f32.mrb[0].mxu0
        %v865 = vadd.f32 0.0, %v864
        %v866 = vpop.f32.mrb[0].mxu0
        %v867 = vadd.f32 0.0, %v866
        %v868 = vpop.f32.mrb[0].mxu0
        %v869 = vadd.f32 0.0, %v868
        %870 = vmatprep.mubr.bf16.mxu0 0
        %871 = vmatmul.mubr.bf16.gmra.mrb[0].mxu0 %v545
        %v872 = vpop.f32.mrb[0].mxu0
        %v873 = vadd.f32 0.0, %v872
        %v874 = vpop.f32.mrb[0].mxu0
        %v875 = vadd.f32 0.0, %v874
        %v876 = vpop.f32.mrb[0].mxu0
        %v877 = vadd.f32 0.0, %v876
        %v878 = vpop.f32.mrb[0].mxu0
        %v879 = vadd.f32 0.0, %v878
        %880 = vmatprep.mubr.bf16.mxu0 0
        %881 = vmatmul.mubr.bf16.gmra.mrb[0].mxu0 %v546
        %v882 = vpop.f32.mrb[0].mxu0
        %v883 = vadd.f32 0.0, %v882
        %v884 = vpop.f32.mrb[0].mxu0
        %v885 = vadd.f32 0.0, %v884
        %v886 = vpop.f32.mrb[0].mxu0
        %v887 = vadd.f32 0.0, %v886
        %v888 = vpop.f32.mrb[0].mxu0
        %v889 = vadd.f32 0.0, %v888
        %890 = vmatprep.mubr.bf16.mxu0 0
        %891 = vmatmul.mubr.bf16.gmra.mrb[0].mxu0 %v547
        %v892 = vpop.f32.mrb[0].mxu0
        %v893 = vadd.f32 0.0, %v892
        %v894 = vpop.f32.mrb[0].mxu0
        %v895 = vadd.f32 0.0, %v894
        %v896 = vpop.f32.mrb[0].mxu0
        %v897 = vadd.f32 0.0, %v896
        %v898 = vpop.f32.mrb[0].mxu0
        %v899 = vadd.f32 0.0, %v898
        %900 = vdwg.mxu0
        %v901 = vld [vmem:[#allocation3] sm:$0xff]
        %v902 = vld [vmem:[#allocation3 + $0x8] sm:$0xff]
        %v903 = vld [vmem:[#allocation3 + $0x10] sm:$0xff]
        %v904 = vld [vmem:[#allocation3 + $0x18] sm:$0xff]
        %v905 = vld [vmem:[#allocation3 + $0x20] sm:$0xff]
        %v906 = vld [vmem:[#allocation3 + $0x28] sm:$0xff]
        %v907 = vld [vmem:[#allocation3 + $0x30] sm:$0xff]
        %v908 = vld [vmem:[#allocation3 + $0x38] sm:$0xff]
        %v909 = vld [vmem:[#allocation3 + $0x40] sm:$0xff]
        %v910 = vld [vmem:[#allocation3 + $0x48] sm:$0xff]
        %v911 = vld [vmem:[#allocation3 + $0x50] sm:$0xff]
        %v912 = vld [vmem:[#allocation3 + $0x58] sm:$0xff]
        %v913 = vld [vmem:[#allocation3 + $0x60] sm:$0xff]
        %v914 = vld [vmem:[#allocation3 + $0x68] sm:$0xff]
        %v915 = vld [vmem:[#allocation3 + $0x70] sm:$0xff]
        %v916 = vld [vmem:[#allocation3 + $0x78] sm:$0xff]
        %v917 = vld [vmem:[#allocation3 + $0x80] sm:$0xff]
        %v918 = vld [vmem:[#allocation3 + $0x88] sm:$0xff]
        %v919 = vld [vmem:[#allocation3 + $0x90] sm:$0xff]
        %v920 = vld [vmem:[#allocation3 + $0x98] sm:$0xff]
        %v921 = vld [vmem:[#allocation3 + $0xa0] sm:$0xff]
        %v922 = vld [vmem:[#allocation3 + $0xa8] sm:$0xff]
        %v923 = vld [vmem:[#allocation3 + $0xb0] sm:$0xff]
        %v924 = vld [vmem:[#allocation3 + $0xb8] sm:$0xff]
        %v925 = vld [vmem:[#allocation3 + $0xc0] sm:$0xff]
        %v926 = vld [vmem:[#allocation3 + $0xc8] sm:$0xff]
        %v927 = vld [vmem:[#allocation3 + $0xd0] sm:$0xff]
        %v928 = vld [vmem:[#allocation3 + $0xd8] sm:$0xff]
        %v929 = vld [vmem:[#allocation3 + $0xe0] sm:$0xff]
        %v930 = vld [vmem:[#allocation3 + $0xe8] sm:$0xff]
        %v931 = vld [vmem:[#allocation3 + $0xf0] sm:$0xff]
        %v932 = vld [vmem:[#allocation3 + $0xf8] sm:$0xff]
        %v933 = vmax.f32 %v743, %v745
        %934 = vmax.xlane.f32.xlu0 %v933
        %v935 = vpop.xlane.xlu0 %934
        %v936 = vmax.f32 %v747, %v749
        %937 = vmax.xlane.f32.xlu0 %v936
        %v938 = vpop.xlane.xlu0 %937
        %v939 = vmax.f32 %v753, %v755
        %940 = vmax.xlane.f32.xlu0 %v939
        %v941 = vpop.xlane.xlu0 %940
        %v942 = vmax.f32 %v757, %v759
        %943 = vmax.xlane.f32.xlu0 %v942
        %v944 = vpop.xlane.xlu0 %943
        %v945 = vmax.f32 %v763, %v765
        %946 = vmax.xlane.f32.xlu0 %v945
        %v947 = vpop.xlane.xlu0 %946
        %v948 = vmax.f32 %v767, %v769
        %949 = vmax.xlane.f32.xlu0 %v948
        %v950 = vpop.xlane.xlu0 %949
        %v951 = vmax.f32 %v773, %v775
        %952 = vmax.xlane.f32.xlu0 %v951
        %v953 = vpop.xlane.xlu0 %952
        %v954 = vmax.f32 %v777, %v779
        %955 = vmax.xlane.f32.xlu0 %v954
        %v956 = vpop.xlane.xlu0 %955
        %v957 = vmax.f32 %v783, %v785
        %958 = vmax.xlane.f32.xlu0 %v957
        %v959 = vpop.xlane.xlu0 %958
        %v960 = vmax.f32 %v787, %v789
        %961 = vmax.xlane.f32.xlu0 %v960
        %v962 = vpop.xlane.xlu0 %961
        %v963 = vmax.f32 %v793, %v795
        %964 = vmax.xlane.f32.xlu0 %v963
        %v965 = vpop.xlane.xlu0 %964
        %v966 = vmax.f32 %v797, %v799
        %967 = vmax.xlane.f32.xlu0 %v966
        %v968 = vpop.xlane.xlu0 %967
        %v969 = vmax.f32 %v803, %v805
        %970 = vmax.xlane.f32.xlu0 %v969
        %v971 = vpop.xlane.xlu0 %970
        %v972 = vmax.f32 %v807, %v809
        %973 = vmax.xlane.f32.xlu0 %v972
        %v974 = vpop.xlane.xlu0 %973
        %v975 = vmax.f32 %v813, %v815
        %976 = vmax.xlane.f32.xlu0 %v975
        %v977 = vpop.xlane.xlu0 %976
        %v978 = vmax.f32 %v817, %v819
        %979 = vmax.xlane.f32.xlu0 %v978
        %v980 = vpop.xlane.xlu0 %979
        %v981 = vmax.f32 %v823, %v825
        %982 = vmax.xlane.f32.xlu0 %v981
        %v983 = vpop.xlane.xlu0 %982
        %v984 = vmax.f32 %v827, %v829
        %985 = vmax.xlane.f32.xlu0 %v984
        %v986 = vpop.xlane.xlu0 %985
        %v987 = vmax.f32 %v833, %v835
        %988 = vmax.xlane.f32.xlu0 %v987
        %v989 = vpop.xlane.xlu0 %988
        %v990 = vmax.f32 %v837, %v839
        %991 = vmax.xlane.f32.xlu0 %v990
        %v992 = vpop.xlane.xlu0 %991
        %v993 = vmax.f32 %v843, %v845
        %994 = vmax.xlane.f32.xlu0 %v993
        %v995 = vpop.xlane.xlu0 %994
        %v996 = vmax.f32 %v847, %v849
        %997 = vmax.xlane.f32.xlu0 %v996
        %v998 = vpop.xlane.xlu0 %997
        %v999 = vmax.f32 %v853, %v855
        %1000 = vmax.xlane.f32.xlu0 %v999
        %v1001 = vpop.xlane.xlu0 %1000
        %v1002 = vmax.f32 %v857, %v859
        %1003 = vmax.xlane.f32.xlu0 %v1002
        %v1004 = vpop.xlane.xlu0 %1003
        %v1005 = vmax.f32 %v863, %v865
        %1006 = vmax.xlane.f32.xlu0 %v1005
        %v1007 = vpop.xlane.xlu0 %1006
        %v1008 = vmax.f32 %v867, %v869
        %1009 = vmax.xlane.f32.xlu0 %v1008
        %v1010 = vpop.xlane.xlu0 %1009
        %v1011 = vmax.f32 %v873, %v875
        %1012 = vmax.xlane.f32.xlu0 %v1011
        %v1013 = vpop.xlane.xlu0 %1012
        %v1014 = vmax.f32 %v877, %v879
        %1015 = vmax.xlane.f32.xlu0 %v1014
        %v1016 = vpop.xlane.xlu0 %1015
        %v1017 = vmax.f32 %v883, %v885
        %1018 = vmax.xlane.f32.xlu0 %v1017
        %v1019 = vpop.xlane.xlu0 %1018
        %v1020 = vmax.f32 %v887, %v889
        %1021 = vmax.xlane.f32.xlu0 %v1020
        %v1022 = vpop.xlane.xlu0 %1021
        %v1023 = vmax.f32 %v893, %v895
        %1024 = vmax.xlane.f32.xlu0 %v1023
        %v1025 = vpop.xlane.xlu0 %1024
        %v1026 = vmax.f32 %v897, %v899
        %1027 = vmax.xlane.f32.xlu0 %v1026
        %v1028 = vpop.xlane.xlu0 %1027
        %v1029 = vmax.f32 %v901, %v935
        %v1030 = vmax.f32 %v902, %v938
        %v1031 = vmax.f32 %v903, %v941
        %v1032 = vmax.f32 %v904, %v944
        %v1033 = vmax.f32 %v905, %v947
        %v1034 = vmax.f32 %v906, %v950
        %v1035 = vmax.f32 %v907, %v953
        %v1036 = vmax.f32 %v908, %v956
        %v1037 = vmax.f32 %v909, %v959
        %v1038 = vmax.f32 %v910, %v962
        %v1039 = vmax.f32 %v911, %v965
        %v1040 = vmax.f32 %v912, %v968
        %v1041 = vmax.f32 %v913, %v971
        %v1042 = vmax.f32 %v914, %v974
        %v1043 = vmax.f32 %v915, %v977
        %v1044 = vmax.f32 %v916, %v980
        %v1045 = vmax.f32 %v917, %v983
        %v1046 = vmax.f32 %v918, %v986
        %v1047 = vmax.f32 %v919, %v989
        %v1048 = vmax.f32 %v920, %v992
        %v1049 = vmax.f32 %v921, %v995
        %v1050 = vmax.f32 %v922, %v998
        %v1051 = vmax.f32 %v923, %v1001
        %v1052 = vmax.f32 %v924, %v1004
        %v1053 = vmax.f32 %v925, %v1007
        %v1054 = vmax.f32 %v926, %v1010
        %v1055 = vmax.f32 %v927, %v1013
        %v1056 = vmax.f32 %v928, %v1016
        %v1057 = vmax.f32 %v929, %v1019
        %v1058 = vmax.f32 %v930, %v1022
        %v1059 = vmax.f32 %v931, %v1025
        %v1060 = vmax.f32 %v932, %v1028
        %v1061 = vsub.f32 %v901, %v1029
        %v1062 = vsub.f32 %v902, %v1030
        %v1063 = vsub.f32 %v903, %v1031
        %v1064 = vsub.f32 %v904, %v1032
        %v1065 = vsub.f32 %v905, %v1033
        %v1066 = vsub.f32 %v906, %v1034
        %v1067 = vsub.f32 %v907, %v1035
        %v1068 = vsub.f32 %v908, %v1036
        %v1069 = vsub.f32 %v909, %v1037
        %v1070 = vsub.f32 %v910, %v1038
        %v1071 = vsub.f32 %v911, %v1039
        %v1072 = vsub.f32 %v912, %v1040
        %v1073 = vsub.f32 %v913, %v1041
        %v1074 = vsub.f32 %v914, %v1042
        %v1075 = vsub.f32 %v915, %v1043
        %v1076 = vsub.f32 %v916, %v1044
        %v1077 = vsub.f32 %v917, %v1045
        %v1078 = vsub.f32 %v918, %v1046
        %v1079 = vsub.f32 %v919, %v1047
        %v1080 = vsub.f32 %v920, %v1048
        %v1081 = vsub.f32 %v921, %v1049
        %v1082 = vsub.f32 %v922, %v1050
        %v1083 = vsub.f32 %v923, %v1051
        %v1084 = vsub.f32 %v924, %v1052
        %v1085 = vsub.f32 %v925, %v1053
        %v1086 = vsub.f32 %v926, %v1054
        %v1087 = vsub.f32 %v927, %v1055
        %v1088 = vsub.f32 %v928, %v1056
        %v1089 = vsub.f32 %v929, %v1057
        %v1090 = vsub.f32 %v930, %v1058
        %v1091 = vsub.f32 %v931, %v1059
        %v1092 = vsub.f32 %v932, %v1060
        %v1093 = vpow.pop %v1061
        %v1094 = vpow.pop %v1062
        %v1095 = vpow.pop %v1063
        %v1096 = vpow.pop %v1064
        %v1097 = vpow.pop %v1065
        %v1098 = vpow.pop %v1066
        %v1099 = vpow.pop %v1067
        %v1100 = vpow.pop %v1068
        %v1101 = vpow.pop %v1069
        %v1102 = vpow.pop %v1070
        %v1103 = vpow.pop %v1071
        %v1104 = vpow.pop %v1072
        %v1105 = vpow.pop %v1073
        %v1106 = vpow.pop %v1074
        %v1107 = vpow.pop %v1075
        %v1108 = vpow.pop %v1076
        %v1109 = vpow.pop %v1077
        %v1110 = vpow.pop %v1078
        %v1111 = vpow.pop %v1079
        %v1112 = vpow.pop %v1080
        %v1113 = vpow.pop %v1081
        %v1114 = vpow.pop %v1082
        %v1115 = vpow.pop %v1083
        %v1116 = vpow.pop %v1084
        %v1117 = vpow.pop %v1085
        %v1118 = vpow.pop %v1086
        %v1119 = vpow.pop %v1087
        %v1120 = vpow.pop %v1088
        %v1121 = vpow.pop %v1089
        %v1122 = vpow.pop %v1090
        %v1123 = vpow.pop %v1091
        %v1124 = vpow.pop %v1092
        %1126 = vset.pattern.permute.xlu0 0
        %1127 = vperm.xlu0 %1126, %v1029
        %v1128 = vpop.permute.xlu0 %1127
        %1131 = vset.pattern.permute.xlu0 0
        %1132 = vperm.xlu0 %1131, %v1030
        %v1133 = vpop.permute.xlu0 %1132
        %1136 = vset.pattern.permute.xlu0 0
        %1137 = vperm.xlu0 %1136, %v1031
        %v1138 = vpop.permute.xlu0 %1137
        %1141 = vset.pattern.permute.xlu0 0
        %1142 = vperm.xlu0 %1141, %v1032
        %v1143 = vpop.permute.xlu0 %1142
        %1146 = vset.pattern.permute.xlu0 0
        %1147 = vperm.xlu0 %1146, %v1033
        %v1148 = vpop.permute.xlu0 %1147
        %1151 = vset.pattern.permute.xlu0 0
        %1152 = vperm.xlu0 %1151, %v1034
        %v1153 = vpop.permute.xlu0 %1152
        %1156 = vset.pattern.permute.xlu0 0
        %1157 = vperm.xlu0 %1156, %v1035
        %v1158 = vpop.permute.xlu0 %1157
        %1161 = vset.pattern.permute.xlu0 0
        %1162 = vperm.xlu0 %1161, %v1036
        %v1163 = vpop.permute.xlu0 %1162
        %1166 = vset.pattern.permute.xlu0 0
        %1167 = vperm.xlu0 %1166, %v1037
        %v1168 = vpop.permute.xlu0 %1167
        %1171 = vset.pattern.permute.xlu0 0
        %1172 = vperm.xlu0 %1171, %v1038
        %v1173 = vpop.permute.xlu0 %1172
        %1176 = vset.pattern.permute.xlu0 0
        %1177 = vperm.xlu0 %1176, %v1039
        %v1178 = vpop.permute.xlu0 %1177
        %1181 = vset.pattern.permute.xlu0 0
        %1182 = vperm.xlu0 %1181, %v1040
        %v1183 = vpop.permute.xlu0 %1182
        %1186 = vset.pattern.permute.xlu0 0
        %1187 = vperm.xlu0 %1186, %v1041
        %v1188 = vpop.permute.xlu0 %1187
        %1191 = vset.pattern.permute.xlu0 0
        %1192 = vperm.xlu0 %1191, %v1042
        %v1193 = vpop.permute.xlu0 %1192
        %1196 = vset.pattern.permute.xlu0 0
        %1197 = vperm.xlu0 %1196, %v1043
        %v1198 = vpop.permute.xlu0 %1197
        %1201 = vset.pattern.permute.xlu0 0
        %1202 = vperm.xlu0 %1201, %v1044
        %v1203 = vpop.permute.xlu0 %1202
        %1206 = vset.pattern.permute.xlu0 0
        %1207 = vperm.xlu0 %1206, %v1045
        %v1208 = vpop.permute.xlu0 %1207
        %1211 = vset.pattern.permute.xlu0 0
        %1212 = vperm.xlu0 %1211, %v1046
        %v1213 = vpop.permute.xlu0 %1212
        %1216 = vset.pattern.permute.xlu0 0
        %1217 = vperm.xlu0 %1216, %v1047
        %v1218 = vpop.permute.xlu0 %1217
        %1221 = vset.pattern.permute.xlu0 0
        %1222 = vperm.xlu0 %1221, %v1048
        %v1223 = vpop.permute.xlu0 %1222
        %1226 = vset.pattern.permute.xlu0 0
        %1227 = vperm.xlu0 %1226, %v1049
        %v1228 = vpop.permute.xlu0 %1227
        %1231 = vset.pattern.permute.xlu0 0
        %1232 = vperm.xlu0 %1231, %v1050
        %v1233 = vpop.permute.xlu0 %1232
        %1236 = vset.pattern.permute.xlu0 0
        %1237 = vperm.xlu0 %1236, %v1051
        %v1238 = vpop.permute.xlu0 %1237
        %1241 = vset.pattern.permute.xlu0 0
        %1242 = vperm.xlu0 %1241, %v1052
        %v1243 = vpop.permute.xlu0 %1242
        %1246 = vset.pattern.permute.xlu0 0
        %1247 = vperm.xlu0 %1246, %v1053
        %v1248 = vpop.permute.xlu0 %1247
        %1251 = vset.pattern.permute.xlu0 0
        %1252 = vperm.xlu0 %1251, %v1054
        %v1253 = vpop.permute.xlu0 %1252
        %1256 = vset.pattern.permute.xlu0 0
        %1257 = vperm.xlu0 %1256, %v1055
        %v1258 = vpop.permute.xlu0 %1257
        %1261 = vset.pattern.permute.xlu0 0
        %1262 = vperm.xlu0 %1261, %v1056
        %v1263 = vpop.permute.xlu0 %1262
        %1266 = vset.pattern.permute.xlu0 0
        %1267 = vperm.xlu0 %1266, %v1057
        %v1268 = vpop.permute.xlu0 %1267
        %1271 = vset.pattern.permute.xlu0 0
        %1272 = vperm.xlu0 %1271, %v1058
        %v1273 = vpop.permute.xlu0 %1272
        %1276 = vset.pattern.permute.xlu0 0
        %1277 = vperm.xlu0 %1276, %v1059
        %v1278 = vpop.permute.xlu0 %1277
        %1281 = vset.pattern.permute.xlu0 0
        %1282 = vperm.xlu0 %1281, %v1060
        %v1283 = vpop.permute.xlu0 %1282
        %v1285 = vsub.f32 %v743, %v1128
        %v1286 = vsub.f32 %v745, %v1128
        %v1287 = vsub.f32 %v747, %v1133
        %v1288 = vsub.f32 %v749, %v1133
        %v1289 = vsub.f32 %v753, %v1138
        %v1290 = vsub.f32 %v755, %v1138
        %v1291 = vsub.f32 %v757, %v1143
        %v1292 = vsub.f32 %v759, %v1143
        %v1293 = vsub.f32 %v763, %v1148
        %v1294 = vsub.f32 %v765, %v1148
        %v1295 = vsub.f32 %v767, %v1153
        %v1296 = vsub.f32 %v769, %v1153
        %v1297 = vsub.f32 %v773, %v1158
        %v1298 = vsub.f32 %v775, %v1158
        %v1299 = vsub.f32 %v777, %v1163
        %v1300 = vsub.f32 %v779, %v1163
        %v1301 = vsub.f32 %v783, %v1168
        %v1302 = vsub.f32 %v785, %v1168
        %v1303 = vsub.f32 %v787, %v1173
        %v1304 = vsub.f32 %v789, %v1173
        %v1305 = vsub.f32 %v793, %v1178
        %v1306 = vsub.f32 %v795, %v1178
        %v1307 = vsub.f32 %v797, %v1183
        %v1308 = vsub.f32 %v799, %v1183
        %v1309 = vsub.f32 %v803, %v1188
        %v1310 = vsub.f32 %v805, %v1188
        %v1311 = vsub.f32 %v807, %v1193
        %v1312 = vsub.f32 %v809, %v1193
        %v1313 = vsub.f32 %v813, %v1198
        %v1314 = vsub.f32 %v815, %v1198
        %v1315 = vsub.f32 %v817, %v1203
        %v1316 = vsub.f32 %v819, %v1203
        %v1317 = vsub.f32 %v823, %v1208
        %v1318 = vsub.f32 %v825, %v1208
        %v1319 = vsub.f32 %v827, %v1213
        %v1320 = vsub.f32 %v829, %v1213
        %v1321 = vsub.f32 %v833, %v1218
        %v1322 = vsub.f32 %v835, %v1218
        %v1323 = vsub.f32 %v837, %v1223
        %v1324 = vsub.f32 %v839, %v1223
        %v1325 = vsub.f32 %v843, %v1228
        %v1326 = vsub.f32 %v845, %v1228
        %v1327 = vsub.f32 %v847, %v1233
        %v1328 = vsub.f32 %v849, %v1233
        %v1329 = vsub.f32 %v853, %v1238
        %v1330 = vsub.f32 %v855, %v1238
        %v1331 = vsub.f32 %v857, %v1243
        %v1332 = vsub.f32 %v859, %v1243
        %v1333 = vsub.f32 %v863, %v1248
        %v1334 = vsub.f32 %v865, %v1248
        %v1335 = vsub.f32 %v867, %v1253
        %v1336 = vsub.f32 %v869, %v1253
        %v1337 = vsub.f32 %v873, %v1258
        %v1338 = vsub.f32 %v875, %v1258
        %v1339 = vsub.f32 %v877, %v1263
        %v1340 = vsub.f32 %v879, %v1263
        %v1341 = vsub.f32 %v883, %v1268
        %v1342 = vsub.f32 %v885, %v1268
        %v1343 = vsub.f32 %v887, %v1273
        %v1344 = vsub.f32 %v889, %v1273
        %v1345 = vsub.f32 %v893, %v1278
        %v1346 = vsub.f32 %v895, %v1278
        %v1347 = vsub.f32 %v897, %v1283
        %v1348 = vsub.f32 %v899, %v1283
        %v1349 = vpow.pop %v1285
        %v1350 = vpow.pop %v1286
        %v1351 = vpow.pop %v1287
        %v1352 = vpow.pop %v1288
        %v1353 = vpow.pop %v1289
        %v1354 = vpow.pop %v1290
        %v1355 = vpow.pop %v1291
        %v1356 = vpow.pop %v1292
        %v1357 = vpow.pop %v1293
        %v1358 = vpow.pop %v1294
        %v1359 = vpow.pop %v1295
        %v1360 = vpow.pop %v1296
        %v1361 = vpow.pop %v1297
        %v1362 = vpow.pop %v1298
        %v1363 = vpow.pop %v1299
        %v1364 = vpow.pop %v1300
        %v1365 = vpow.pop %v1301
        %v1366 = vpow.pop %v1302
        %v1367 = vpow.pop %v1303
        %v1368 = vpow.pop %v1304
        %v1369 = vpow.pop %v1305
        %v1370 = vpow.pop %v1306
        %v1371 = vpow.pop %v1307
        %v1372 = vpow.pop %v1308
        %v1373 = vpow.pop %v1309
        %v1374 = vpow.pop %v1310
        %v1375 = vpow.pop %v1311
        %v1376 = vpow.pop %v1312
        %v1377 = vpow.pop %v1313
        %v1378 = vpow.pop %v1314
        %v1379 = vpow.pop %v1315
        %v1380 = vpow.pop %v1316
        %v1381 = vpow.pop %v1317
        %v1382 = vpow.pop %v1318
        %v1383 = vpow.pop %v1319
        %v1384 = vpow.pop %v1320
        %v1385 = vpow.pop %v1321
        %v1386 = vpow.pop %v1322
        %v1387 = vpow.pop %v1323
        %v1388 = vpow.pop %v1324
        %v1389 = vpow.pop %v1325
        %v1390 = vpow.pop %v1326
        %v1391 = vpow.pop %v1327
        %v1392 = vpow.pop %v1328
        %v1393 = vpow.pop %v1329
        %v1394 = vpow.pop %v1330
        %v1395 = vpow.pop %v1331
        %v1396 = vpow.pop %v1332
        %v1397 = vpow.pop %v1333
        %v1398 = vpow.pop %v1334
        %v1399 = vpow.pop %v1335
        %v1400 = vpow.pop %v1336
        %v1401 = vpow.pop %v1337
        %v1402 = vpow.pop %v1338
        %v1403 = vpow.pop %v1339
        %v1404 = vpow.pop %v1340
        %v1405 = vpow.pop %v1341
        %v1406 = vpow.pop %v1342
        %v1407 = vpow.pop %v1343
        %v1408 = vpow.pop %v1344
        %v1409 = vpow.pop %v1345
        %v1410 = vpow.pop %v1346
        %v1411 = vpow.pop %v1347
        %v1412 = vpow.pop %v1348
        %v1413 = vld [vmem:[#allocation4] sm:$0xff]
        %v1414 = vld [vmem:[#allocation4 + $0x8] sm:$0xff]
        %v1415 = vld [vmem:[#allocation4 + $0x10] sm:$0xff]
        %v1416 = vld [vmem:[#allocation4 + $0x18] sm:$0xff]
        %v1417 = vld [vmem:[#allocation4 + $0x20] sm:$0xff]
        %v1418 = vld [vmem:[#allocation4 + $0x28] sm:$0xff]
        %v1419 = vld [vmem:[#allocation4 + $0x30] sm:$0xff]
        %v1420 = vld [vmem:[#allocation4 + $0x38] sm:$0xff]
        %v1421 = vld [vmem:[#allocation4 + $0x40] sm:$0xff]
        %v1422 = vld [vmem:[#allocation4 + $0x48] sm:$0xff]
        %v1423 = vld [vmem:[#allocation4 + $0x50] sm:$0xff]
        %v1424 = vld [vmem:[#allocation4 + $0x58] sm:$0xff]
        %v1425 = vld [vmem:[#allocation4 + $0x60] sm:$0xff]
        %v1426 = vld [vmem:[#allocation4 + $0x68] sm:$0xff]
        %v1427 = vld [vmem:[#allocation4 + $0x70] sm:$0xff]
        %v1428 = vld [vmem:[#allocation4 + $0x78] sm:$0xff]
        %v1429 = vld [vmem:[#allocation4 + $0x80] sm:$0xff]
        %v1430 = vld [vmem:[#allocation4 + $0x88] sm:$0xff]
        %v1431 = vld [vmem:[#allocation4 + $0x90] sm:$0xff]
        %v1432 = vld [vmem:[#allocation4 + $0x98] sm:$0xff]
        %v1433 = vld [vmem:[#allocation4 + $0xa0] sm:$0xff]
        %v1434 = vld [vmem:[#allocation4 + $0xa8] sm:$0xff]
        %v1435 = vld [vmem:[#allocation4 + $0xb0] sm:$0xff]
        %v1436 = vld [vmem:[#allocation4 + $0xb8] sm:$0xff]
        %v1437 = vld [vmem:[#allocation4 + $0xc0] sm:$0xff]
        %v1438 = vld [vmem:[#allocation4 + $0xc8] sm:$0xff]
        %v1439 = vld [vmem:[#allocation4 + $0xd0] sm:$0xff]
        %v1440 = vld [vmem:[#allocation4 + $0xd8] sm:$0xff]
        %v1441 = vld [vmem:[#allocation4 + $0xe0] sm:$0xff]
        %v1442 = vld [vmem:[#allocation4 + $0xe8] sm:$0xff]
        %v1443 = vld [vmem:[#allocation4 + $0xf0] sm:$0xff]
        %v1444 = vld [vmem:[#allocation4 + $0xf8] sm:$0xff]
        %1446 = vset.pattern.permute.xlu0 0
        %1447 = vperm.xlu0 %1446, %v1093
        %v1448 = vpop.permute.xlu0 %1447
        %1451 = vset.pattern.permute.xlu0 0
        %1452 = vperm.xlu0 %1451, %v1094
        %v1453 = vpop.permute.xlu0 %1452
        %1456 = vset.pattern.permute.xlu0 0
        %1457 = vperm.xlu0 %1456, %v1095
        %v1458 = vpop.permute.xlu0 %1457
        %1461 = vset.pattern.permute.xlu0 0
        %1462 = vperm.xlu0 %1461, %v1096
        %v1463 = vpop.permute.xlu0 %1462
        %1466 = vset.pattern.permute.xlu0 0
        %1467 = vperm.xlu0 %1466, %v1097
        %v1468 = vpop.permute.xlu0 %1467
        %1471 = vset.pattern.permute.xlu0 0
        %1472 = vperm.xlu0 %1471, %v1098
        %v1473 = vpop.permute.xlu0 %1472
        %1476 = vset.pattern.permute.xlu0 0
        %1477 = vperm.xlu0 %1476, %v1099
        %v1478 = vpop.permute.xlu0 %1477
        %1481 = vset.pattern.permute.xlu0 0
        %1482 = vperm.xlu0 %1481, %v1100
        %v1483 = vpop.permute.xlu0 %1482
        %1486 = vset.pattern.permute.xlu0 0
        %1487 = vperm.xlu0 %1486, %v1101
        %v1488 = vpop.permute.xlu0 %1487
        %1491 = vset.pattern.permute.xlu0 0
        %1492 = vperm.xlu0 %1491, %v1102
        %v1493 = vpop.permute.xlu0 %1492
        %1496 = vset.pattern.permute.xlu0 0
        %1497 = vperm.xlu0 %1496, %v1103
        %v1498 = vpop.permute.xlu0 %1497
        %1501 = vset.pattern.permute.xlu0 0
        %1502 = vperm.xlu0 %1501, %v1104
        %v1503 = vpop.permute.xlu0 %1502
        %1506 = vset.pattern.permute.xlu0 0
        %1507 = vperm.xlu0 %1506, %v1105
        %v1508 = vpop.permute.xlu0 %1507
        %1511 = vset.pattern.permute.xlu0 0
        %1512 = vperm.xlu0 %1511, %v1106
        %v1513 = vpop.permute.xlu0 %1512
        %1516 = vset.pattern.permute.xlu0 0
        %1517 = vperm.xlu0 %1516, %v1107
        %v1518 = vpop.permute.xlu0 %1517
        %1521 = vset.pattern.permute.xlu0 0
        %1522 = vperm.xlu0 %1521, %v1108
        %v1523 = vpop.permute.xlu0 %1522
        %1526 = vset.pattern.permute.xlu0 0
        %1527 = vperm.xlu0 %1526, %v1109
        %v1528 = vpop.permute.xlu0 %1527
        %1531 = vset.pattern.permute.xlu0 0
        %1532 = vperm.xlu0 %1531, %v1110
        %v1533 = vpop.permute.xlu0 %1532
        %1536 = vset.pattern.permute.xlu0 0
        %1537 = vperm.xlu0 %1536, %v1111
        %v1538 = vpop.permute.xlu0 %1537
        %1541 = vset.pattern.permute.xlu0 0
        %1542 = vperm.xlu0 %1541, %v1112
        %v1543 = vpop.permute.xlu0 %1542
        %1546 = vset.pattern.permute.xlu0 0
        %1547 = vperm.xlu0 %1546, %v1113
        %v1548 = vpop.permute.xlu0 %1547
        %1551 = vset.pattern.permute.xlu0 0
        %1552 = vperm.xlu0 %1551, %v1114
        %v1553 = vpop.permute.xlu0 %1552
        %1556 = vset.pattern.permute.xlu0 0
        %1557 = vperm.xlu0 %1556, %v1115
        %v1558 = vpop.permute.xlu0 %1557
        %1561 = vset.pattern.permute.xlu0 0
        %1562 = vperm.xlu0 %1561, %v1116
        %v1563 = vpop.permute.xlu0 %1562
        %1566 = vset.pattern.permute.xlu0 0
        %1567 = vperm.xlu0 %1566, %v1117
        %v1568 = vpop.permute.xlu0 %1567
        %1571 = vset.pattern.permute.xlu0 0
        %1572 = vperm.xlu0 %1571, %v1118
        %v1573 = vpop.permute.xlu0 %1572
        %1576 = vset.pattern.permute.xlu0 0
        %1577 = vperm.xlu0 %1576, %v1119
        %v1578 = vpop.permute.xlu0 %1577
        %1581 = vset.pattern.permute.xlu0 0
        %1582 = vperm.xlu0 %1581, %v1120
        %v1583 = vpop.permute.xlu0 %1582
        %1586 = vset.pattern.permute.xlu0 0
        %1587 = vperm.xlu0 %1586, %v1121
        %v1588 = vpop.permute.xlu0 %1587
        %1591 = vset.pattern.permute.xlu0 0
        %1592 = vperm.xlu0 %1591, %v1122
        %v1593 = vpop.permute.xlu0 %1592
        %1596 = vset.pattern.permute.xlu0 0
        %1597 = vperm.xlu0 %1596, %v1123
        %v1598 = vpop.permute.xlu0 %1597
        %1601 = vset.pattern.permute.xlu0 0
        %1602 = vperm.xlu0 %1601, %v1124
        %v1603 = vpop.permute.xlu0 %1602
        %v1605 = vmul.f32 %v1448, %v1413
        %v1606 = vmul.f32 %v1453, %v1414
        %v1607 = vmul.f32 %v1458, %v1415
        %v1608 = vmul.f32 %v1463, %v1416
        %v1609 = vmul.f32 %v1468, %v1417
        %v1610 = vmul.f32 %v1473, %v1418
        %v1611 = vmul.f32 %v1478, %v1419
        %v1612 = vmul.f32 %v1483, %v1420
        %v1613 = vmul.f32 %v1488, %v1421
        %v1614 = vmul.f32 %v1493, %v1422
        %v1615 = vmul.f32 %v1498, %v1423
        %v1616 = vmul.f32 %v1503, %v1424
        %v1617 = vmul.f32 %v1508, %v1425
        %v1618 = vmul.f32 %v1513, %v1426
        %v1619 = vmul.f32 %v1518, %v1427
        %v1620 = vmul.f32 %v1523, %v1428
        %v1621 = vmul.f32 %v1528, %v1429
        %v1622 = vmul.f32 %v1533, %v1430
        %v1623 = vmul.f32 %v1538, %v1431
        %v1624 = vmul.f32 %v1543, %v1432
        %v1625 = vmul.f32 %v1548, %v1433
        %v1626 = vmul.f32 %v1553, %v1434
        %v1627 = vmul.f32 %v1558, %v1435
        %v1628 = vmul.f32 %v1563, %v1436
        %v1629 = vmul.f32 %v1568, %v1437
        %v1630 = vmul.f32 %v1573, %v1438
        %v1631 = vmul.f32 %v1578, %v1439
        %v1632 = vmul.f32 %v1583, %v1440
        %v1633 = vmul.f32 %v1588, %v1441
        %v1634 = vmul.f32 %v1593, %v1442
        %v1635 = vmul.f32 %v1598, %v1443
        %v1636 = vmul.f32 %v1603, %v1444
        %v1637 = vadd.f32 %v1349, %v1350
        %1638 = vadd.xlane.f32.xlu0 %v1637
        %v1639 = vpop.xlane.xlu0 %1638
        %v1640 = vadd.f32 %v1351, %v1352
        %1641 = vadd.xlane.f32.xlu0 %v1640
        %v1642 = vpop.xlane.xlu0 %1641
        %v1643 = vadd.f32 %v1353, %v1354
        %1644 = vadd.xlane.f32.xlu0 %v1643
        %v1645 = vpop.xlane.xlu0 %1644
        %v1646 = vadd.f32 %v1355, %v1356
        %1647 = vadd.xlane.f32.xlu0 %v1646
        %v1648 = vpop.xlane.xlu0 %1647
        %v1649 = vadd.f32 %v1357, %v1358
        %1650 = vadd.xlane.f32.xlu0 %v1649
        %v1651 = vpop.xlane.xlu0 %1650
        %v1652 = vadd.f32 %v1359, %v1360
        %1653 = vadd.xlane.f32.xlu0 %v1652
        %v1654 = vpop.xlane.xlu0 %1653
        %v1655 = vadd.f32 %v1361, %v1362
        %1656 = vadd.xlane.f32.xlu0 %v1655
        %v1657 = vpop.xlane.xlu0 %1656
        %v1658 = vadd.f32 %v1363, %v1364
        %1659 = vadd.xlane.f32.xlu0 %v1658
        %v1660 = vpop.xlane.xlu0 %1659
        %v1661 = vadd.f32 %v1365, %v1366
        %1662 = vadd.xlane.f32.xlu0 %v1661
        %v1663 = vpop.xlane.xlu0 %1662
        %v1664 = vadd.f32 %v1367, %v1368
        %1665 = vadd.xlane.f32.xlu0 %v1664
        %v1666 = vpop.xlane.xlu0 %1665
        %v1667 = vadd.f32 %v1369, %v1370
        %1668 = vadd.xlane.f32.xlu0 %v1667
        %v1669 = vpop.xlane.xlu0 %1668
        %v1670 = vadd.f32 %v1371, %v1372
        %1671 = vadd.xlane.f32.xlu0 %v1670
        %v1672 = vpop.xlane.xlu0 %1671
        %v1673 = vadd.f32 %v1373, %v1374
        %1674 = vadd.xlane.f32.xlu0 %v1673
        %v1675 = vpop.xlane.xlu0 %1674
        %v1676 = vadd.f32 %v1375, %v1376
        %1677 = vadd.xlane.f32.xlu0 %v1676
        %v1678 = vpop.xlane.xlu0 %1677
        %v1679 = vadd.f32 %v1377, %v1378
        %1680 = vadd.xlane.f32.xlu0 %v1679
        %v1681 = vpop.xlane.xlu0 %1680
        %v1682 = vadd.f32 %v1379, %v1380
        %1683 = vadd.xlane.f32.xlu0 %v1682
        %v1684 = vpop.xlane.xlu0 %1683
        %v1685 = vadd.f32 %v1381, %v1382
        %1686 = vadd.xlane.f32.xlu0 %v1685
        %v1687 = vpop.xlane.xlu0 %1686
        %v1688 = vadd.f32 %v1383, %v1384
        %1689 = vadd.xlane.f32.xlu0 %v1688
        %v1690 = vpop.xlane.xlu0 %1689
        %v1691 = vadd.f32 %v1385, %v1386
        %1692 = vadd.xlane.f32.xlu0 %v1691
        %v1693 = vpop.xlane.xlu0 %1692
        %v1694 = vadd.f32 %v1387, %v1388
        %1695 = vadd.xlane.f32.xlu0 %v1694
        %v1696 = vpop.xlane.xlu0 %1695
        %v1697 = vadd.f32 %v1389, %v1390
        %1698 = vadd.xlane.f32.xlu0 %v1697
        %v1699 = vpop.xlane.xlu0 %1698
        %v1700 = vadd.f32 %v1391, %v1392
        %1701 = vadd.xlane.f32.xlu0 %v1700
        %v1702 = vpop.xlane.xlu0 %1701
        %v1703 = vadd.f32 %v1393, %v1394
        %1704 = vadd.xlane.f32.xlu0 %v1703
        %v1705 = vpop.xlane.xlu0 %1704
        %v1706 = vadd.f32 %v1395, %v1396
        %1707 = vadd.xlane.f32.xlu0 %v1706
        %v1708 = vpop.xlane.xlu0 %1707
        %v1709 = vadd.f32 %v1397, %v1398
        %1710 = vadd.xlane.f32.xlu0 %v1709
        %v1711 = vpop.xlane.xlu0 %1710
        %v1712 = vadd.f32 %v1399, %v1400
        %1713 = vadd.xlane.f32.xlu0 %v1712
        %v1714 = vpop.xlane.xlu0 %1713
        %v1715 = vadd.f32 %v1401, %v1402
        %1716 = vadd.xlane.f32.xlu0 %v1715
        %v1717 = vpop.xlane.xlu0 %1716
        %v1718 = vadd.f32 %v1403, %v1404
        %1719 = vadd.xlane.f32.xlu0 %v1718
        %v1720 = vpop.xlane.xlu0 %1719
        %v1721 = vadd.f32 %v1405, %v1406
        %1722 = vadd.xlane.f32.xlu0 %v1721
        %v1723 = vpop.xlane.xlu0 %1722
        %v1724 = vadd.f32 %v1407, %v1408
        %1725 = vadd.xlane.f32.xlu0 %v1724
        %v1726 = vpop.xlane.xlu0 %1725
        %v1727 = vadd.f32 %v1409, %v1410
        %1728 = vadd.xlane.f32.xlu0 %v1727
        %v1729 = vpop.xlane.xlu0 %1728
        %v1730 = vadd.f32 %v1411, %v1412
        %1731 = vadd.xlane.f32.xlu0 %v1730
        %v1732 = vpop.xlane.xlu0 %1731
        %v1733 = vadd.f32 %v1605, %v1639
        %v1734 = vadd.f32 %v1606, %v1642
        %v1735 = vadd.f32 %v1607, %v1645
        %v1736 = vadd.f32 %v1608, %v1648
        %v1737 = vadd.f32 %v1609, %v1651
        %v1738 = vadd.f32 %v1610, %v1654
        %v1739 = vadd.f32 %v1611, %v1657
        %v1740 = vadd.f32 %v1612, %v1660
        %v1741 = vadd.f32 %v1613, %v1663
        %v1742 = vadd.f32 %v1614, %v1666
        %v1743 = vadd.f32 %v1615, %v1669
        %v1744 = vadd.f32 %v1616, %v1672
        %v1745 = vadd.f32 %v1617, %v1675
        %v1746 = vadd.f32 %v1618, %v1678
        %v1747 = vadd.f32 %v1619, %v1681
        %v1748 = vadd.f32 %v1620, %v1684
        %v1749 = vadd.f32 %v1621, %v1687
        %v1750 = vadd.f32 %v1622, %v1690
        %v1751 = vadd.f32 %v1623, %v1693
        %v1752 = vadd.f32 %v1624, %v1696
        %v1753 = vadd.f32 %v1625, %v1699
        %v1754 = vadd.f32 %v1626, %v1702
        %v1755 = vadd.f32 %v1627, %v1705
        %v1756 = vadd.f32 %v1628, %v1708
        %v1757 = vadd.f32 %v1629, %v1711
        %v1758 = vadd.f32 %v1630, %v1714
        %v1759 = vadd.f32 %v1631, %v1717
        %v1760 = vadd.f32 %v1632, %v1720
        %v1761 = vadd.f32 %v1633, %v1723
        %v1762 = vadd.f32 %v1634, %v1726
        %v1763 = vadd.f32 %v1635, %v1729
        %v1764 = vadd.f32 %v1636, %v1732
        %1765 = vst [vmem:[#allocation4] sm:$0xff] %v1733
        %1766 = vst [vmem:[#allocation4 + $0x8] sm:$0xff] %v1734
        %1767 = vst [vmem:[#allocation4 + $0x10] sm:$0xff] %v1735
        %1768 = vst [vmem:[#allocation4 + $0x18] sm:$0xff] %v1736
        %1769 = vst [vmem:[#allocation4 + $0x20] sm:$0xff] %v1737
        %1770 = vst [vmem:[#allocation4 + $0x28] sm:$0xff] %v1738
        %1771 = vst [vmem:[#allocation4 + $0x30] sm:$0xff] %v1739
        %1772 = vst [vmem:[#allocation4 + $0x38] sm:$0xff] %v1740
        %1773 = vst [vmem:[#allocation4 + $0x40] sm:$0xff] %v1741
        %1774 = vst [vmem:[#allocation4 + $0x48] sm:$0xff] %v1742
        %1775 = vst [vmem:[#allocation4 + $0x50] sm:$0xff] %v1743
        %1776 = vst [vmem:[#allocation4 + $0x58] sm:$0xff] %v1744
        %1777 = vst [vmem:[#allocation4 + $0x60] sm:$0xff] %v1745
        %1778 = vst [vmem:[#allocation4 + $0x68] sm:$0xff] %v1746
        %1779 = vst [vmem:[#allocation4 + $0x70] sm:$0xff] %v1747
        %1780 = vst [vmem:[#allocation4 + $0x78] sm:$0xff] %v1748
        %1781 = vst [vmem:[#allocation4 + $0x80] sm:$0xff] %v1749
        %1782 = vst [vmem:[#allocation4 + $0x88] sm:$0xff] %v1750
        %1783 = vst [vmem:[#allocation4 + $0x90] sm:$0xff] %v1751
        %1784 = vst [vmem:[#allocation4 + $0x98] sm:$0xff] %v1752
        %1785 = vst [vmem:[#allocation4 + $0xa0] sm:$0xff] %v1753
        %1786 = vst [vmem:[#allocation4 + $0xa8] sm:$0xff] %v1754
        %1787 = vst [vmem:[#allocation4 + $0xb0] sm:$0xff] %v1755
        %1788 = vst [vmem:[#allocation4 + $0xb8] sm:$0xff] %v1756
        %1789 = vst [vmem:[#allocation4 + $0xc0] sm:$0xff] %v1757
        %1790 = vst [vmem:[#allocation4 + $0xc8] sm:$0xff] %v1758
        %1791 = vst [vmem:[#allocation4 + $0xd0] sm:$0xff] %v1759
        %1792 = vst [vmem:[#allocation4 + $0xd8] sm:$0xff] %v1760
        %1793 = vst [vmem:[#allocation4 + $0xe0] sm:$0xff] %v1761
        %1794 = vst [vmem:[#allocation4 + $0xe8] sm:$0xff] %v1762
        %1795 = vst [vmem:[#allocation4 + $0xf0] sm:$0xff] %v1763
        %1796 = vst [vmem:[#allocation4 + $0xf8] sm:$0xff] %v1764
        %v1797 = vld [vmem:[#allocation5] sm:$0xff]
        %v1798 = vld [vmem:[#allocation5 + $0x8] sm:$0xff]
        %v1799 = vld [vmem:[#allocation5 + $0x10] sm:$0xff]
        %v1800 = vld [vmem:[#allocation5 + $0x18] sm:$0xff]
        %v1801 = vld [vmem:[#allocation5 + $0x20] sm:$0xff]
        %v1802 = vld [vmem:[#allocation5 + $0x28] sm:$0xff]
        %v1803 = vld [vmem:[#allocation5 + $0x30] sm:$0xff]
        %v1804 = vld [vmem:[#allocation5 + $0x38] sm:$0xff]
        %v1805 = vld [vmem:[#allocation5 + $0x40] sm:$0xff]
        %v1806 = vld [vmem:[#allocation5 + $0x48] sm:$0xff]
        %v1807 = vld [vmem:[#allocation5 + $0x50] sm:$0xff]
        %v1808 = vld [vmem:[#allocation5 + $0x58] sm:$0xff]
        %v1809 = vld [vmem:[#allocation5 + $0x60] sm:$0xff]
        %v1810 = vld [vmem:[#allocation5 + $0x68] sm:$0xff]
        %v1811 = vld [vmem:[#allocation5 + $0x70] sm:$0xff]
        %v1812 = vld [vmem:[#allocation5 + $0x78] sm:$0xff]
        %v1813 = vld [vmem:[#allocation5 + $0x80] sm:$0xff]
        %v1814 = vld [vmem:[#allocation5 + $0x88] sm:$0xff]
        %v1815 = vld [vmem:[#allocation5 + $0x90] sm:$0xff]
        %v1816 = vld [vmem:[#allocation5 + $0x98] sm:$0xff]
        %v1817 = vld [vmem:[#allocation5 + $0xa0] sm:$0xff]
        %v1818 = vld [vmem:[#allocation5 + $0xa8] sm:$0xff]
        %v1819 = vld [vmem:[#allocation5 + $0xb0] sm:$0xff]
        %v1820 = vld [vmem:[#allocation5 + $0xb8] sm:$0xff]
        %v1821 = vld [vmem:[#allocation5 + $0xc0] sm:$0xff]
        %v1822 = vld [vmem:[#allocation5 + $0xc8] sm:$0xff]
        %v1823 = vld [vmem:[#allocation5 + $0xd0] sm:$0xff]
        %v1824 = vld [vmem:[#allocation5 + $0xd8] sm:$0xff]
        %v1825 = vld [vmem:[#allocation5 + $0xe0] sm:$0xff]
        %v1826 = vld [vmem:[#allocation5 + $0xe8] sm:$0xff]
        %v1827 = vld [vmem:[#allocation5 + $0xf0] sm:$0xff]
        %v1828 = vld [vmem:[#allocation5 + $0xf8] sm:$0xff]
        %v1829 = vmul.f32 %v1448, %v1797
        %v1830 = vmul.f32 %v1453, %v1798
        %v1831 = vmul.f32 %v1458, %v1799
        %v1832 = vmul.f32 %v1463, %v1800
        %v1833 = vmul.f32 %v1468, %v1801
        %v1834 = vmul.f32 %v1473, %v1802
        %v1835 = vmul.f32 %v1478, %v1803
        %v1836 = vmul.f32 %v1483, %v1804
        %v1837 = vmul.f32 %v1488, %v1805
        %v1838 = vmul.f32 %v1493, %v1806
        %v1839 = vmul.f32 %v1498, %v1807
        %v1840 = vmul.f32 %v1503, %v1808
        %v1841 = vmul.f32 %v1508, %v1809
        %v1842 = vmul.f32 %v1513, %v1810
        %v1843 = vmul.f32 %v1518, %v1811
        %v1844 = vmul.f32 %v1523, %v1812
        %v1845 = vmul.f32 %v1528, %v1813
        %v1846 = vmul.f32 %v1533, %v1814
        %v1847 = vmul.f32 %v1538, %v1815
        %v1848 = vmul.f32 %v1543, %v1816
        %v1849 = vmul.f32 %v1548, %v1817
        %v1850 = vmul.f32 %v1553, %v1818
        %v1851 = vmul.f32 %v1558, %v1819
        %v1852 = vmul.f32 %v1563, %v1820
        %v1853 = vmul.f32 %v1568, %v1821
        %v1854 = vmul.f32 %v1573, %v1822
        %v1855 = vmul.f32 %v1578, %v1823
        %v1856 = vmul.f32 %v1583, %v1824
        %v1857 = vmul.f32 %v1588, %v1825
        %v1858 = vmul.f32 %v1593, %v1826
        %v1859 = vmul.f32 %v1598, %v1827
        %v1860 = vmul.f32 %v1603, %v1828
        %v1861 = vpack.c.bf16 %v1351, %v1349
        %v1862 = vpack.c.bf16 %v1352, %v1350
        %v1863 = vpack.c.bf16 %v1355, %v1353
        %v1864 = vpack.c.bf16 %v1356, %v1354
        %v1865 = vpack.c.bf16 %v1359, %v1357
        %v1866 = vpack.c.bf16 %v1360, %v1358
        %v1867 = vpack.c.bf16 %v1363, %v1361
        %v1868 = vpack.c.bf16 %v1364, %v1362
        %v1869 = vpack.c.bf16 %v1367, %v1365
        %v1870 = vpack.c.bf16 %v1368, %v1366
        %v1871 = vpack.c.bf16 %v1371, %v1369
        %v1872 = vpack.c.bf16 %v1372, %v1370
        %v1873 = vpack.c.bf16 %v1375, %v1373
        %v1874 = vpack.c.bf16 %v1376, %v1374
        %v1875 = vpack.c.bf16 %v1379, %v1377
        %v1876 = vpack.c.bf16 %v1380, %v1378
        %v1877 = vpack.c.bf16 %v1383, %v1381
        %v1878 = vpack.c.bf16 %v1384, %v1382
        %v1879 = vpack.c.bf16 %v1387, %v1385
        %v1880 = vpack.c.bf16 %v1388, %v1386
        %v1881 = vpack.c.bf16 %v1391, %v1389
        %v1882 = vpack.c.bf16 %v1392, %v1390
        %v1883 = vpack.c.bf16 %v1395, %v1393
        %v1884 = vpack.c.bf16 %v1396, %v1394
        %v1885 = vpack.c.bf16 %v1399, %v1397
        %v1886 = vpack.c.bf16 %v1400, %v1398
        %v1887 = vpack.c.bf16 %v1403, %v1401
        %v1888 = vpack.c.bf16 %v1404, %v1402
        %v1889 = vpack.c.bf16 %v1407, %v1405
        %v1890 = vpack.c.bf16 %v1408, %v1406
        %v1891 = vpack.c.bf16 %v1411, %v1409
        %v1892 = vpack.c.bf16 %v1412, %v1410
        %v1925 = vunpack.c.l.b16 %v580
        %v1926 = vunpack.c.l.b16 %v581
        %v1927 = vunpack.c.l.b16 %v582
        %v1928 = vunpack.c.l.b16 %v583
        %v1929 = vunpack.c.l.b16 %v584
        %v1930 = vunpack.c.l.b16 %v585
        %v1931 = vunpack.c.l.b16 %v586
        %v1932 = vunpack.c.l.b16 %v587
        %v1933 = vunpack.c.l.b16 %v588
        %v1934 = vunpack.c.l.b16 %v589
        %v1935 = vunpack.c.l.b16 %v590
        %v1936 = vunpack.c.l.b16 %v591
        %v1937 = vunpack.c.l.b16 %v592
        %v1938 = vunpack.c.l.b16 %v593
        %v1939 = vunpack.c.l.b16 %v594
        %v1940 = vunpack.c.l.b16 %v595
        %v1941 = vunpack.c.l.b16 %v596
        %v1942 = vunpack.c.l.b16 %v597
        %v1943 = vunpack.c.l.b16 %v598
        %v1944 = vunpack.c.l.b16 %v599
        %v1945 = vunpack.c.l.b16 %v600
        %v1946 = vunpack.c.l.b16 %v601
        %v1947 = vunpack.c.l.b16 %v602
        %v1948 = vunpack.c.l.b16 %v603
        %v1949 = vunpack.c.l.b16 %v604
        %v1950 = vunpack.c.l.b16 %v605
        %v1951 = vunpack.c.l.b16 %v606
        %v1952 = vunpack.c.l.b16 %v607
        %v1953 = vunpack.c.l.b16 %v608
        %v1954 = vunpack.c.l.b16 %v609
        %v1955 = vunpack.c.l.b16 %v610
        %v1956 = vunpack.c.l.b16 %v611
        %v1957 = vpack.c.b16 %v1926, %v1925
        %v1958 = vpack.c.b16 %v1928, %v1927
        %v1959 = vpack.c.b16 %v1930, %v1929
        %v1960 = vpack.c.b16 %v1932, %v1931
        %v1961 = vpack.c.b16 %v1934, %v1933
        %v1962 = vpack.c.b16 %v1936, %v1935
        %v1963 = vpack.c.b16 %v1938, %v1937
        %v1964 = vpack.c.b16 %v1940, %v1939
        %v1965 = vpack.c.b16 %v1942, %v1941
        %v1966 = vpack.c.b16 %v1944, %v1943
        %v1967 = vpack.c.b16 %v1946, %v1945
        %v1968 = vpack.c.b16 %v1948, %v1947
        %v1969 = vpack.c.b16 %v1950, %v1949
        %v1970 = vpack.c.b16 %v1952, %v1951
        %v1971 = vpack.c.b16 %v1954, %v1953
        %v1972 = vpack.c.b16 %v1956, %v1955
        %1989 = vmatprep.subr.bf16.mxu0 0
        %1990 = vmatpush1.bf16.msra.mxu0 %v1957
        %1991 = vmatprep.subr.bf16.mxu0 0
        %1992 = vmatpush1.bf16.msra.mxu0 %v1958
        %1993 = vmatprep.subr.bf16.mxu0 0
        %1994 = vmatpush1.bf16.msra.mxu0 %v1959
        %1995 = vmatprep.subr.bf16.mxu0 0
        %1996 = vmatpush1.bf16.msra.mxu0 %v1960
        %1997 = vmatprep.subr.bf16.mxu0 0
        %1998 = vmatpush1.bf16.msra.mxu0 %v1961
        %1999 = vmatprep.subr.bf16.mxu0 0
        %2000 = vmatpush1.bf16.msra.mxu0 %v1962
        %2001 = vmatprep.subr.bf16.mxu0 0
        %2002 = vmatpush1.bf16.msra.mxu0 %v1963
        %2003 = vmatprep.subr.bf16.mxu0 0
        %2004 = vmatpush1.bf16.msra.mxu0 %v1964
        %2005 = vmatprep.subr.bf16.mxu0 0
        %2006 = vmatpush1.bf16.msra.mxu0 %v1965
        %2007 = vmatprep.subr.bf16.mxu0 0
        %2008 = vmatpush1.bf16.msra.mxu0 %v1966
        %2009 = vmatprep.subr.bf16.mxu0 0
        %2010 = vmatpush1.bf16.msra.mxu0 %v1967
        %2011 = vmatprep.subr.bf16.mxu0 0
        %2012 = vmatpush1.bf16.msra.mxu0 %v1968
        %2013 = vmatprep.subr.bf16.mxu0 0
        %2014 = vmatpush1.bf16.msra.mxu0 %v1969
        %2015 = vmatprep.subr.bf16.mxu0 0
        %2016 = vmatpush1.bf16.msra.mxu0 %v1970
        %2017 = vmatprep.subr.bf16.mxu0 0
        %2018 = vmatpush1.bf16.msra.mxu0 %v1971
        %2019 = vmatprep.subr.bf16.mxu0 0
        %2020 = vmatpush1.bf16.msra.mxu0 %v1972
        %2021 = vmatprep.mubr.bf16.mxu0 %v1862
        %2022 = vmatmul.mubr.bf16.gmra.mrb[0].mxu0 %v1861
        %v2023 = vpop.f32.mrb[0].mxu0
        %v2024 = vadd.f32 0.0, %v2023
        %v2025 = vpop.f32.mrb[0].mxu0
        %v2026 = vpop.f32.mrb[0].mxu0
        %v2027 = vadd.f32 0.0, %v2026
        %v2028 = vpop.f32.mrb[0].mxu0
        %2029 = vmatprep.mubr.bf16.mxu0 %v1864
        %2030 = vmatmul.mubr.bf16.gmra.mrb[0].mxu0 %v1863
        %v2031 = vpop.f32.mrb[0].mxu0
        %v2032 = vadd.f32 0.0, %v2031
        %v2033 = vpop.f32.mrb[0].mxu0
        %v2034 = vpop.f32.mrb[0].mxu0
        %v2035 = vadd.f32 0.0, %v2034
        %v2036 = vpop.f32.mrb[0].mxu0
        %2037 = vmatprep.mubr.bf16.mxu0 %v1866
        %2038 = vmatmul.mubr.bf16.gmra.mrb[0].mxu0 %v1865
        %v2039 = vpop.f32.mrb[0].mxu0
        %v2040 = vadd.f32 0.0, %v2039
        %v2041 = vpop.f32.mrb[0].mxu0
        %v2042 = vpop.f32.mrb[0].mxu0
        %v2043 = vadd.f32 0.0, %v2042
        %v2044 = vpop.f32.mrb[0].mxu0
        %2045 = vmatprep.mubr.bf16.mxu0 %v1868
        %2046 = vmatmul.mubr.bf16.gmra.mrb[0].mxu0 %v1867
        %v2047 = vpop.f32.mrb[0].mxu0
        %v2048 = vadd.f32 0.0, %v2047
        %v2049 = vpop.f32.mrb[0].mxu0
        %v2050 = vpop.f32.mrb[0].mxu0
        %v2051 = vadd.f32 0.0, %v2050
        %v2052 = vpop.f32.mrb[0].mxu0
        %2053 = vmatprep.mubr.bf16.mxu0 %v1870
        %2054 = vmatmul.mubr.bf16.gmra.mrb[0].mxu0 %v1869
        %v2055 = vpop.f32.mrb[0].mxu0
        %v2056 = vadd.f32 0.0, %v2055
        %v2057 = vpop.f32.mrb[0].mxu0
        %v2058 = vpop.f32.mrb[0].mxu0
        %v2059 = vadd.f32 0.0, %v2058
        %v2060 = vpop.f32.mrb[0].mxu0
        %2061 = vmatprep.mubr.bf16.mxu0 %v1872
        %2062 = vmatmul.mubr.bf16.gmra.mrb[0].mxu0 %v1871
        %v2063 = vpop.f32.mrb[0].mxu0
        %v2064 = vadd.f32 0.0, %v2063
        %v2065 = vpop.f32.mrb[0].mxu0
        %v2066 = vpop.f32.mrb[0].mxu0
        %v2067 = vadd.f32 0.0, %v2066
        %v2068 = vpop.f32.mrb[0].mxu0
        %2069 = vmatprep.mubr.bf16.mxu0 %v1874
        %2070 = vmatmul.mubr.bf16.gmra.mrb[0].mxu0 %v1873
        %v2071 = vpop.f32.mrb[0].mxu0
        %v2072 = vadd.f32 0.0, %v2071
        %v2073 = vpop.f32.mrb[0].mxu0
        %v2074 = vpop.f32.mrb[0].mxu0
        %v2075 = vadd.f32 0.0, %v2074
        %v2076 = vpop.f32.mrb[0].mxu0
        %2077 = vmatprep.mubr.bf16.mxu0 %v1876
        %2078 = vmatmul.mubr.bf16.gmra.mrb[0].mxu0 %v1875
        %v2079 = vpop.f32.mrb[0].mxu0
        %v2080 = vadd.f32 0.0, %v2079
        %v2081 = vpop.f32.mrb[0].mxu0
        %v2082 = vpop.f32.mrb[0].mxu0
        %v2083 = vadd.f32 0.0, %v2082
        %v2084 = vpop.f32.mrb[0].mxu0
        %2085 = vmatprep.mubr.bf16.mxu0 %v1878
        %2086 = vmatmul.mubr.bf16.gmra.mrb[0].mxu0 %v1877
        %v2087 = vpop.f32.mrb[0].mxu0
        %v2088 = vadd.f32 0.0, %v2087
        %v2089 = vpop.f32.mrb[0].mxu0
        %v2090 = vpop.f32.mrb[0].mxu0
        %v2091 = vadd.f32 0.0, %v2090
        %v2092 = vpop.f32.mrb[0].mxu0
        %2093 = vmatprep.mubr.bf16.mxu0 %v1880
        %2094 = vmatmul.mubr.bf16.gmra.mrb[0].mxu0 %v1879
        %v2095 = vpop.f32.mrb[0].mxu0
        %v2096 = vadd.f32 0.0, %v2095
        %v2097 = vpop.f32.mrb[0].mxu0
        %v2098 = vpop.f32.mrb[0].mxu0
        %v2099 = vadd.f32 0.0, %v2098
        %v2100 = vpop.f32.mrb[0].mxu0
        %2101 = vmatprep.mubr.bf16.mxu0 %v1882
        %2102 = vmatmul.mubr.bf16.gmra.mrb[0].mxu0 %v1881
        %v2103 = vpop.f32.mrb[0].mxu0
        %v2104 = vadd.f32 0.0, %v2103
        %v2105 = vpop.f32.mrb[0].mxu0
        %v2106 = vpop.f32.mrb[0].mxu0
        %v2107 = vadd.f32 0.0, %v2106
        %v2108 = vpop.f32.mrb[0].mxu0
        %2109 = vmatprep.mubr.bf16.mxu0 %v1884
        %2110 = vmatmul.mubr.bf16.gmra.mrb[0].mxu0 %v1883
        %v2111 = vpop.f32.mrb[0].mxu0
        %v2112 = vadd.f32 0.0, %v2111
        %v2113 = vpop.f32.mrb[0].mxu0
        %v2114 = vpop.f32.mrb[0].mxu0
        %v2115 = vadd.f32 0.0, %v2114
        %v2116 = vpop.f32.mrb[0].mxu0
        %2117 = vmatprep.mubr.bf16.mxu0 %v1886
        %2118 = vmatmul.mubr.bf16.gmra.mrb[0].mxu0 %v1885
        %v2119 = vpop.f32.mrb[0].mxu0
        %v2120 = vadd.f32 0.0, %v2119
        %v2121 = vpop.f32.mrb[0].mxu0
        %v2122 = vpop.f32.mrb[0].mxu0
        %v2123 = vadd.f32 0.0, %v2122
        %v2124 = vpop.f32.mrb[0].mxu0
        %2125 = vmatprep.mubr.bf16.mxu0 %v1888
        %2126 = vmatmul.mubr.bf16.gmra.mrb[0].mxu0 %v1887
        %v2127 = vpop.f32.mrb[0].mxu0
        %v2128 = vadd.f32 0.0, %v2127
        %v2129 = vpop.f32.mrb[0].mxu0
        %v2130 = vpop.f32.mrb[0].mxu0
        %v2131 = vadd.f32 0.0, %v2130
        %v2132 = vpop.f32.mrb[0].mxu0
        %2133 = vmatprep.mubr.bf16.mxu0 %v1890
        %2134 = vmatmul.mubr.bf16.gmra.mrb[0].mxu0 %v1889
        %v2135 = vpop.f32.mrb[0].mxu0
        %v2136 = vadd.f32 0.0, %v2135
        %v2137 = vpop.f32.mrb[0].mxu0
        %v2138 = vpop.f32.mrb[0].mxu0
        %v2139 = vadd.f32 0.0, %v2138
        %v2140 = vpop.f32.mrb[0].mxu0
        %2141 = vmatprep.mubr.bf16.mxu0 %v1892
        %2142 = vmatmul.mubr.bf16.gmra.mrb[0].mxu0 %v1891
        %v2143 = vpop.f32.mrb[0].mxu0
        %v2144 = vadd.f32 0.0, %v2143
        %v2145 = vpop.f32.mrb[0].mxu0
        %v2146 = vpop.f32.mrb[0].mxu0
        %v2147 = vadd.f32 0.0, %v2146
        %v2148 = vpop.f32.mrb[0].mxu0
        %2149 = vdwg.mxu0
        %v2150 = vadd.f32 %v1829, %v2024
        %v2151 = vadd.f32 %v1830, %v2027
        %v2152 = vadd.f32 %v1831, %v2032
        %v2153 = vadd.f32 %v1832, %v2035
        %v2154 = vadd.f32 %v1833, %v2040
        %v2155 = vadd.f32 %v1834, %v2043
        %v2156 = vadd.f32 %v1835, %v2048
        %v2157 = vadd.f32 %v1836, %v2051
        %v2158 = vadd.f32 %v1837, %v2056
        %v2159 = vadd.f32 %v1838, %v2059
        %v2160 = vadd.f32 %v1839, %v2064
        %v2161 = vadd.f32 %v1840, %v2067
        %v2162 = vadd.f32 %v1841, %v2072
        %v2163 = vadd.f32 %v1842, %v2075
        %v2164 = vadd.f32 %v1843, %v2080
        %v2165 = vadd.f32 %v1844, %v2083
        %v2166 = vadd.f32 %v1845, %v2088
        %v2167 = vadd.f32 %v1846, %v2091
        %v2168 = vadd.f32 %v1847, %v2096
        %v2169 = vadd.f32 %v1848, %v2099
        %v2170 = vadd.f32 %v1849, %v2104
        %v2171 = vadd.f32 %v1850, %v2107
        %v2172 = vadd.f32 %v1851, %v2112
        %v2173 = vadd.f32 %v1852, %v2115
        %v2174 = vadd.f32 %v1853, %v2120
        %v2175 = vadd.f32 %v1854, %v2123
        %v2176 = vadd.f32 %v1855, %v2128
        %v2177 = vadd.f32 %v1856, %v2131
        %v2178 = vadd.f32 %v1857, %v2136
        %v2179 = vadd.f32 %v1858, %v2139
        %v2180 = vadd.f32 %v1859, %v2144
        %v2181 = vadd.f32 %v1860, %v2147
        %2182 = vst [vmem:[#allocation5] sm:$0xff] %v2150
        %2183 = vst [vmem:[#allocation5 + $0x8] sm:$0xff] %v2151
        %2184 = vst [vmem:[#allocation5 + $0x10] sm:$0xff] %v2152
        %2185 = vst [vmem:[#allocation5 + $0x18] sm:$0xff] %v2153
        %2186 = vst [vmem:[#allocation5 + $0x20] sm:$0xff] %v2154
        %2187 = vst [vmem:[#allocation5 + $0x28] sm:$0xff] %v2155
        %2188 = vst [vmem:[#allocation5 + $0x30] sm:$0xff] %v2156
        %2189 = vst [vmem:[#allocation5 + $0x38] sm:$0xff] %v2157
        %2190 = vst [vmem:[#allocation5 + $0x40] sm:$0xff] %v2158
        %2191 = vst [vmem:[#allocation5 + $0x48] sm:$0xff] %v2159
        %2192 = vst [vmem:[#allocation5 + $0x50] sm:$0xff] %v2160
        %2193 = vst [vmem:[#allocation5 + $0x58] sm:$0xff] %v2161
        %2194 = vst [vmem:[#allocation5 + $0x60] sm:$0xff] %v2162
        %2195 = vst [vmem:[#allocation5 + $0x68] sm:$0xff] %v2163
        %2196 = vst [vmem:[#allocation5 + $0x70] sm:$0xff] %v2164
        %2197 = vst [vmem:[#allocation5 + $0x78] sm:$0xff] %v2165
        %2198 = vst [vmem:[#allocation5 + $0x80] sm:$0xff] %v2166
        %2199 = vst [vmem:[#allocation5 + $0x88] sm:$0xff] %v2167
        %2200 = vst [vmem:[#allocation5 + $0x90] sm:$0xff] %v2168
        %2201 = vst [vmem:[#allocation5 + $0x98] sm:$0xff] %v2169
        %2202 = vst [vmem:[#allocation5 + $0xa0] sm:$0xff] %v2170
        %2203 = vst [vmem:[#allocation5 + $0xa8] sm:$0xff] %v2171
        %2204 = vst [vmem:[#allocation5 + $0xb0] sm:$0xff] %v2172
        %2205 = vst [vmem:[#allocation5 + $0xb8] sm:$0xff] %v2173
        %2206 = vst [vmem:[#allocation5 + $0xc0] sm:$0xff] %v2174
        %2207 = vst [vmem:[#allocation5 + $0xc8] sm:$0xff] %v2175
        %2208 = vst [vmem:[#allocation5 + $0xd0] sm:$0xff] %v2176
        %2209 = vst [vmem:[#allocation5 + $0xd8] sm:$0xff] %v2177
        %2210 = vst [vmem:[#allocation5 + $0xe0] sm:$0xff] %v2178
        %2211 = vst [vmem:[#allocation5 + $0xe8] sm:$0xff] %v2179
        %2212 = vst [vmem:[#allocation5 + $0xf0] sm:$0xff] %v2180
        %2213 = vst [vmem:[#allocation5 + $0xf8] sm:$0xff] %v2181
        %2214 = vst [vmem:[#allocation3] sm:$0xff] %v1029
        %2215 = vst [vmem:[#allocation3 + $0x8] sm:$0xff] %v1030
        %2216 = vst [vmem:[#allocation3 + $0x10] sm:$0xff] %v1031
        %2217 = vst [vmem:[#allocation3 + $0x18] sm:$0xff] %v1032
        %2218 = vst [vmem:[#allocation3 + $0x20] sm:$0xff] %v1033
        %2219 = vst [vmem:[#allocation3 + $0x28] sm:$0xff] %v1034
        %2220 = vst [vmem:[#allocation3 + $0x30] sm:$0xff] %v1035
        %2221 = vst [vmem:[#allocation3 + $0x38] sm:$0xff] %v1036
        %2222 = vst [vmem:[#allocation3 + $0x40] sm:$0xff] %v1037
        %2223 = vst [vmem:[#allocation3 + $0x48] sm:$0xff] %v1038
        %2224 = vst [vmem:[#allocation3 + $0x50] sm:$0xff] %v1039
        %2225 = vst [vmem:[#allocation3 + $0x58] sm:$0xff] %v1040
        %2226 = vst [vmem:[#allocation3 + $0x60] sm:$0xff] %v1041
        %2227 = vst [vmem:[#allocation3 + $0x68] sm:$0xff] %v1042
        %2228 = vst [vmem:[#allocation3 + $0x70] sm:$0xff] %v1043
        %2229 = vst [vmem:[#allocation3 + $0x78] sm:$0xff] %v1044
        %2230 = vst [vmem:[#allocation3 + $0x80] sm:$0xff] %v1045
        %2231 = vst [vmem:[#allocation3 + $0x88] sm:$0xff] %v1046
        %2232 = vst [vmem:[#allocation3 + $0x90] sm:$0xff] %v1047
        %2233 = vst [vmem:[#allocation3 + $0x98] sm:$0xff] %v1048
        %2234 = vst [vmem:[#allocation3 + $0xa0] sm:$0xff] %v1049
        %2235 = vst [vmem:[#allocation3 + $0xa8] sm:$0xff] %v1050
        %2236 = vst [vmem:[#allocation3 + $0xb0] sm:$0xff] %v1051
        %2237 = vst [vmem:[#allocation3 + $0xb8] sm:$0xff] %v1052
        %2238 = vst [vmem:[#allocation3 + $0xc0] sm:$0xff] %v1053
        %2239 = vst [vmem:[#allocation3 + $0xc8] sm:$0xff] %v1054
        %2240 = vst [vmem:[#allocation3 + $0xd0] sm:$0xff] %v1055
        %2241 = vst [vmem:[#allocation3 + $0xd8] sm:$0xff] %v1056
        %2242 = vst [vmem:[#allocation3 + $0xe0] sm:$0xff] %v1057
        %2243 = vst [vmem:[#allocation3 + $0xe8] sm:$0xff] %v1058
        %2244 = vst [vmem:[#allocation3 + $0xf0] sm:$0xff] %v1059
        %2245 = vst [vmem:[#allocation3 + $0xf8] sm:$0xff] %v1060
        // Predicated region
        $region49: #{tpu_custom_call.1} parent=31 // pred_check
          %p2246 = pneg %p304
        $region50: #{tpu_custom_call.1} parent=31 // pred_check_branch
          %2248 = sbr.rel (%p2246) target = $region52
        $region51: #{tpu_custom_call.1} parent=31 // pred_region
          %v2249 = vld [vmem:[#allocation4] sm:$0xff]
          %v2250 = vld [vmem:[#allocation4 + $0x8] sm:$0xff]
          %v2251 = vld [vmem:[#allocation4 + $0x10] sm:$0xff]
          %v2252 = vld [vmem:[#allocation4 + $0x18] sm:$0xff]
          %v2253 = vld [vmem:[#allocation4 + $0x20] sm:$0xff]
          %v2254 = vld [vmem:[#allocation4 + $0x28] sm:$0xff]
          %v2255 = vld [vmem:[#allocation4 + $0x30] sm:$0xff]
          %v2256 = vld [vmem:[#allocation4 + $0x38] sm:$0xff]
          %v2257 = vld [vmem:[#allocation4 + $0x40] sm:$0xff]
          %v2258 = vld [vmem:[#allocation4 + $0x48] sm:$0xff]
          %v2259 = vld [vmem:[#allocation4 + $0x50] sm:$0xff]
          %v2260 = vld [vmem:[#allocation4 + $0x58] sm:$0xff]
          %v2261 = vld [vmem:[#allocation4 + $0x60] sm:$0xff]
          %v2262 = vld [vmem:[#allocation4 + $0x68] sm:$0xff]
          %v2263 = vld [vmem:[#allocation4 + $0x70] sm:$0xff]
          %v2264 = vld [vmem:[#allocation4 + $0x78] sm:$0xff]
          %v2265 = vld [vmem:[#allocation4 + $0x80] sm:$0xff]
          %v2266 = vld [vmem:[#allocation4 + $0x88] sm:$0xff]
          %v2267 = vld [vmem:[#allocation4 + $0x90] sm:$0xff]
          %v2268 = vld [vmem:[#allocation4 + $0x98] sm:$0xff]
          %v2269 = vld [vmem:[#allocation4 + $0xa0] sm:$0xff]
          %v2270 = vld [vmem:[#allocation4 + $0xa8] sm:$0xff]
          %v2271 = vld [vmem:[#allocation4 + $0xb0] sm:$0xff]
          %v2272 = vld [vmem:[#allocation4 + $0xb8] sm:$0xff]
          %v2273 = vld [vmem:[#allocation4 + $0xc0] sm:$0xff]
          %v2274 = vld [vmem:[#allocation4 + $0xc8] sm:$0xff]
          %v2275 = vld [vmem:[#allocation4 + $0xd0] sm:$0xff]
          %v2276 = vld [vmem:[#allocation4 + $0xd8] sm:$0xff]
          %v2277 = vld [vmem:[#allocation4 + $0xe0] sm:$0xff]
          %v2278 = vld [vmem:[#allocation4 + $0xe8] sm:$0xff]
          %v2279 = vld [vmem:[#allocation4 + $0xf0] sm:$0xff]
          %v2280 = vld [vmem:[#allocation4 + $0xf8] sm:$0xff]
          %v2281 = vrcp.pop %v2249
          %v2282 = vrcp.pop %v2250
          %v2283 = vrcp.pop %v2251
          %v2284 = vrcp.pop %v2252
          %v2285 = vrcp.pop %v2253
          %v2286 = vrcp.pop %v2254
          %v2287 = vrcp.pop %v2255
          %v2288 = vrcp.pop %v2256
          %v2289 = vrcp.pop %v2257
          %v2290 = vrcp.pop %v2258
          %v2291 = vrcp.pop %v2259
          %v2292 = vrcp.pop %v2260
          %v2293 = vrcp.pop %v2261
          %v2294 = vrcp.pop %v2262
          %v2295 = vrcp.pop %v2263
          %v2296 = vrcp.pop %v2264
          %v2297 = vrcp.pop %v2265
          %v2298 = vrcp.pop %v2266
          %v2299 = vrcp.pop %v2267
          %v2300 = vrcp.pop %v2268
          %v2301 = vrcp.pop %v2269
          %v2302 = vrcp.pop %v2270
          %v2303 = vrcp.pop %v2271
          %v2304 = vrcp.pop %v2272
          %v2305 = vrcp.pop %v2273
          %v2306 = vrcp.pop %v2274
          %v2307 = vrcp.pop %v2275
          %v2308 = vrcp.pop %v2276
          %v2309 = vrcp.pop %v2277
          %v2310 = vrcp.pop %v2278
          %v2311 = vrcp.pop %v2279
          %v2312 = vrcp.pop %v2280
          %v2313 = vld [vmem:[#allocation5] sm:$0xff]
          %v2314 = vld [vmem:[#allocation5 + $0x8] sm:$0xff]
          %v2315 = vld [vmem:[#allocation5 + $0x10] sm:$0xff]
          %v2316 = vld [vmem:[#allocation5 + $0x18] sm:$0xff]
          %v2317 = vld [vmem:[#allocation5 + $0x20] sm:$0xff]
          %v2318 = vld [vmem:[#allocation5 + $0x28] sm:$0xff]
          %v2319 = vld [vmem:[#allocation5 + $0x30] sm:$0xff]
          %v2320 = vld [vmem:[#allocation5 + $0x38] sm:$0xff]
          %v2321 = vld [vmem:[#allocation5 + $0x40] sm:$0xff]
          %v2322 = vld [vmem:[#allocation5 + $0x48] sm:$0xff]
          %v2323 = vld [vmem:[#allocation5 + $0x50] sm:$0xff]
          %v2324 = vld [vmem:[#allocation5 + $0x58] sm:$0xff]
          %v2325 = vld [vmem:[#allocation5 + $0x60] sm:$0xff]
          %v2326 = vld [vmem:[#allocation5 + $0x68] sm:$0xff]
          %v2327 = vld [vmem:[#allocation5 + $0x70] sm:$0xff]
          %v2328 = vld [vmem:[#allocation5 + $0x78] sm:$0xff]
          %v2329 = vld [vmem:[#allocation5 + $0x80] sm:$0xff]
          %v2330 = vld [vmem:[#allocation5 + $0x88] sm:$0xff]
          %v2331 = vld [vmem:[#allocation5 + $0x90] sm:$0xff]
          %v2332 = vld [vmem:[#allocation5 + $0x98] sm:$0xff]
          %v2333 = vld [vmem:[#allocation5 + $0xa0] sm:$0xff]
          %v2334 = vld [vmem:[#allocation5 + $0xa8] sm:$0xff]
          %v2335 = vld [vmem:[#allocation5 + $0xb0] sm:$0xff]
          %v2336 = vld [vmem:[#allocation5 + $0xb8] sm:$0xff]
          %v2337 = vld [vmem:[#allocation5 + $0xc0] sm:$0xff]
          %v2338 = vld [vmem:[#allocation5 + $0xc8] sm:$0xff]
          %v2339 = vld [vmem:[#allocation5 + $0xd0] sm:$0xff]
          %v2340 = vld [vmem:[#allocation5 + $0xd8] sm:$0xff]
          %v2341 = vld [vmem:[#allocation5 + $0xe0] sm:$0xff]
          %v2342 = vld [vmem:[#allocation5 + $0xe8] sm:$0xff]
          %v2343 = vld [vmem:[#allocation5 + $0xf0] sm:$0xff]
          %v2344 = vld [vmem:[#allocation5 + $0xf8] sm:$0xff]
          %v2345 = vmul.f32 %v2313, %v2281
          %v2346 = vmul.f32 %v2314, %v2282
          %v2347 = vmul.f32 %v2315, %v2283
          %v2348 = vmul.f32 %v2316, %v2284
          %v2349 = vmul.f32 %v2317, %v2285
          %v2350 = vmul.f32 %v2318, %v2286
          %v2351 = vmul.f32 %v2319, %v2287
          %v2352 = vmul.f32 %v2320, %v2288
          %v2353 = vmul.f32 %v2321, %v2289
          %v2354 = vmul.f32 %v2322, %v2290
          %v2355 = vmul.f32 %v2323, %v2291
          %v2356 = vmul.f32 %v2324, %v2292
          %v2357 = vmul.f32 %v2325, %v2293
          %v2358 = vmul.f32 %v2326, %v2294
          %v2359 = vmul.f32 %v2327, %v2295
          %v2360 = vmul.f32 %v2328, %v2296
          %v2361 = vmul.f32 %v2329, %v2297
          %v2362 = vmul.f32 %v2330, %v2298
          %v2363 = vmul.f32 %v2331, %v2299
          %v2364 = vmul.f32 %v2332, %v2300
          %v2365 = vmul.f32 %v2333, %v2301
          %v2366 = vmul.f32 %v2334, %v2302
          %v2367 = vmul.f32 %v2335, %v2303
          %v2368 = vmul.f32 %v2336, %v2304
          %v2369 = vmul.f32 %v2337, %v2305
          %v2370 = vmul.f32 %v2338, %v2306
          %v2371 = vmul.f32 %v2339, %v2307
          %v2372 = vmul.f32 %v2340, %v2308
          %v2373 = vmul.f32 %v2341, %v2309
          %v2374 = vmul.f32 %v2342, %v2310
          %v2375 = vmul.f32 %v2343, %v2311
          %v2376 = vmul.f32 %v2344, %v2312
          %v2377 = vpack.c.bf16 %v2346, %v2345
          %v2378 = vpack.c.bf16 %v2348, %v2347
          %v2379 = vpack.c.bf16 %v2350, %v2349
          %v2380 = vpack.c.bf16 %v2352, %v2351
          %v2381 = vpack.c.bf16 %v2354, %v2353
          %v2382 = vpack.c.bf16 %v2356, %v2355
          %v2383 = vpack.c.bf16 %v2358, %v2357
          %v2384 = vpack.c.bf16 %v2360, %v2359
          %v2385 = vpack.c.bf16 %v2362, %v2361
          %v2386 = vpack.c.bf16 %v2364, %v2363
          %v2387 = vpack.c.bf16 %v2366, %v2365
          %v2388 = vpack.c.bf16 %v2368, %v2367
          %v2389 = vpack.c.bf16 %v2370, %v2369
          %v2390 = vpack.c.bf16 %v2372, %v2371
          %v2391 = vpack.c.bf16 %v2374, %v2373
          %v2392 = vpack.c.bf16 %v2376, %v2375
          %v2409 = vunpack.c.l.b16 %v2377
          %v2410 = vunpack.c.h.b16 %v2377
          %v2411 = vunpack.c.l.b16 %v2378
          %v2412 = vunpack.c.h.b16 %v2378
          %v2413 = vunpack.c.l.b16 %v2379
          %v2414 = vunpack.c.h.b16 %v2379
          %v2415 = vunpack.c.l.b16 %v2380
          %v2416 = vunpack.c.h.b16 %v2380
          %v2417 = vunpack.c.l.b16 %v2381
          %v2418 = vunpack.c.h.b16 %v2381
          %v2419 = vunpack.c.l.b16 %v2382
          %v2420 = vunpack.c.h.b16 %v2382
          %v2421 = vunpack.c.l.b16 %v2383
          %v2422 = vunpack.c.h.b16 %v2383
          %v2423 = vunpack.c.l.b16 %v2384
          %v2424 = vunpack.c.h.b16 %v2384
          %v2425 = vunpack.c.l.b16 %v2385
          %v2426 = vunpack.c.h.b16 %v2385
          %v2427 = vunpack.c.l.b16 %v2386
          %v2428 = vunpack.c.h.b16 %v2386
          %v2429 = vunpack.c.l.b16 %v2387
          %v2430 = vunpack.c.h.b16 %v2387
          %v2431 = vunpack.c.l.b16 %v2388
          %v2432 = vunpack.c.h.b16 %v2388
          %v2433 = vunpack.c.l.b16 %v2389
          %v2434 = vunpack.c.h.b16 %v2389
          %v2435 = vunpack.c.l.b16 %v2390
          %v2436 = vunpack.c.h.b16 %v2390
          %v2437 = vunpack.c.l.b16 %v2391
          %v2438 = vunpack.c.h.b16 %v2391
          %v2439 = vunpack.c.l.b16 %v2392
          %v2440 = vunpack.c.h.b16 %v2392
          %v2441 = vpack.c.b16 %v2409, %v2409
          %v2442 = vpack.c.b16 %v2410, %v2410
          %v2443 = vpack.c.b16 %v2411, %v2411
          %v2444 = vpack.c.b16 %v2412, %v2412
          %v2445 = vpack.c.b16 %v2413, %v2413
          %v2446 = vpack.c.b16 %v2414, %v2414
          %v2447 = vpack.c.b16 %v2415, %v2415
          %v2448 = vpack.c.b16 %v2416, %v2416
          %v2449 = vpack.c.b16 %v2417, %v2417
          %v2450 = vpack.c.b16 %v2418, %v2418
          %v2451 = vpack.c.b16 %v2419, %v2419
          %v2452 = vpack.c.b16 %v2420, %v2420
          %v2453 = vpack.c.b16 %v2421, %v2421
          %v2454 = vpack.c.b16 %v2422, %v2422
          %v2455 = vpack.c.b16 %v2423, %v2423
          %v2456 = vpack.c.b16 %v2424, %v2424
          %v2457 = vpack.c.b16 %v2425, %v2425
          %v2458 = vpack.c.b16 %v2426, %v2426
          %v2459 = vpack.c.b16 %v2427, %v2427
          %v2460 = vpack.c.b16 %v2428, %v2428
          %v2461 = vpack.c.b16 %v2429, %v2429
          %v2462 = vpack.c.b16 %v2430, %v2430
          %v2463 = vpack.c.b16 %v2431, %v2431
          %v2464 = vpack.c.b16 %v2432, %v2432
          %v2465 = vpack.c.b16 %v2433, %v2433
          %v2466 = vpack.c.b16 %v2434, %v2434
          %v2467 = vpack.c.b16 %v2435, %v2435
          %v2468 = vpack.c.b16 %v2436, %v2436
          %v2469 = vpack.c.b16 %v2437, %v2437
          %v2470 = vpack.c.b16 %v2438, %v2438
          %v2471 = vpack.c.b16 %v2439, %v2439
          %v2472 = vpack.c.b16 %v2440, %v2440
          %2505 = vst [vmem:[%s298] sm:$0xf] %v2441
          %2506 = vst [vmem:[%s298 + $0x4] sm:$0xf] %v2442
          %2507 = vst [vmem:[%s298 + $0x8] sm:$0xf] %v2443
          %2508 = vst [vmem:[%s298 + $0xc] sm:$0xf] %v2444
          %2509 = vst [vmem:[%s298 + $0x10] sm:$0xf] %v2445
          %2510 = vst [vmem:[%s298 + $0x14] sm:$0xf] %v2446
          %2511 = vst [vmem:[%s298 + $0x18] sm:$0xf] %v2447
          %2512 = vst [vmem:[%s298 + $0x1c] sm:$0xf] %v2448
          %2513 = vst [vmem:[%s298 + $0x20] sm:$0xf] %v2449
          %2514 = vst [vmem:[%s298 + $0x24] sm:$0xf] %v2450
          %2515 = vst [vmem:[%s298 + $0x28] sm:$0xf] %v2451
          %2516 = vst [vmem:[%s298 + $0x2c] sm:$0xf] %v2452
          %2517 = vst [vmem:[%s298 + $0x30] sm:$0xf] %v2453
          %2518 = vst [vmem:[%s298 + $0x34] sm:$0xf] %v2454
          %2519 = vst [vmem:[%s298 + $0x38] sm:$0xf] %v2455
          %2520 = vst [vmem:[%s298 + $0x3c] sm:$0xf] %v2456
          %2521 = vst [vmem:[%s298 + $0x40] sm:$0xf] %v2457
          %2522 = vst [vmem:[%s298 + $0x44] sm:$0xf] %v2458
          %2523 = vst [vmem:[%s298 + $0x48] sm:$0xf] %v2459
          %2524 = vst [vmem:[%s298 + $0x4c] sm:$0xf] %v2460
          %2525 = vst [vmem:[%s298 + $0x50] sm:$0xf] %v2461
          %2526 = vst [vmem:[%s298 + $0x54] sm:$0xf] %v2462
          %2527 = vst [vmem:[%s298 + $0x58] sm:$0xf] %v2463
          %2528 = vst [vmem:[%s298 + $0x5c] sm:$0xf] %v2464
          %2529 = vst [vmem:[%s298 + $0x60] sm:$0xf] %v2465
          %2530 = vst [vmem:[%s298 + $0x64] sm:$0xf] %v2466
          %2531 = vst [vmem:[%s298 + $0x68] sm:$0xf] %v2467
          %2532 = vst [vmem:[%s298 + $0x6c] sm:$0xf] %v2468
          %2533 = vst [vmem:[%s298 + $0x70] sm:$0xf] %v2469
          %2534 = vst [vmem:[%s298 + $0x74] sm:$0xf] %v2470
          %2535 = vst [vmem:[%s298 + $0x78] sm:$0xf] %v2471
          %2536 = vst [vmem:[%s298 + $0x7c] sm:$0xf] %v2472
        $region52: #{tpu_custom_call.1} parent=31 // pred_fallthru
          _
        %s2537 = sand.u32 %s136, 1
        %s2538 = scalar_lea.sflag [#allocation8], %s2537
        %s2539 = sand.u32 %s136, 1
        %s2540 = smul.addr %s2539, 128
        %s2541 = scalar_lea.vmem [#allocation12], %s2540
        // Predicated region
        $region53: #{tpu_custom_call.1} parent=31 // pred_check
          %p2542 = pneg %p146
        $region54: #{tpu_custom_call.1} parent=31 // pred_check_branch
          %2544 = sbr.rel (%p2542) target = $region56
        $region55: #{tpu_custom_call.1} parent=31 // pred_region
          %s2545 = smul.u32 32, %s29
          %s2547 = ssub.s32 2048, 2048
          %2548 = vsyncadd %s2538, %s2547
          %s2549 = smul.addr %s2545, 4
          %s2550 = sadd.s32 %s28, %s2549
          %s2551 = smul.addr %s2550, 64
          %s2552 = scalar_lea.hbm %s3, %s2551
          %s2553 = sshll.u32 %s2541, 4
          %s2554 = int_to_ptr.vmem [resolvable:$true] %s2553
          %2559 = dma.vmem_to_hbm [thread:$0]  %s2554, 2048, %s2552, %s2538, 64, 256, 4
        $region56: #{tpu_custom_call.1} parent=31 // pred_fallthru
          _
      $region32: #{tpu_custom_call.1} parent=5 // pred_fallthru
        _
      %p2560 = scmp.le.s32.totalorder 2, %s18
      // Predicated region
      $region57: #{tpu_custom_call.1} parent=5 // pred_check
        %p2561 = pneg %p2560
      $region58: #{tpu_custom_call.1} parent=5 // pred_check_branch
        %2563 = sbr.rel (%p2561) target = $region60
      $region59: #{tpu_custom_call.1} parent=5 // pred_region
        %s2564 = ssub.s32 %s18, 2
        // Predicated region
        $region61: #{tpu_custom_call.1} parent=59 // pred_check
          %p2565 = pneg %p152
        $region62: #{tpu_custom_call.1} parent=59 // pred_check_branch
          %2567 = sbr.rel (%p2565) target = $region64
        $region63: #{tpu_custom_call.1} parent=59 // pred_region
          %s2568 = sand.u32 %s137, 1
          %s2569 = scalar_lea.sflag [#allocation8], %s2568
          %s2570 = sand.u32 %s137, 1
          %s2571 = smul.addr %s2570, 128
          %s2572 = scalar_lea.vmem [#allocation12], %s2571
          %2573 = dma.done %s2569, 2048
        $region64: #{tpu_custom_call.1} parent=59 // pred_fallthru
          _
      $region60: #{tpu_custom_call.1} parent=5 // pred_fallthru
        _
    $region6: #{tpu_custom_call.1} parent=1 // loop_footer
      %s22 = sadd.s32 1, %s18
    $region7: #{tpu_custom_call.1} parent=1 // loop_footer_branch
      %17 = sbr.rel target = $region3
    $region8: #{tpu_custom_call.1} parent=1 // loop_exit
      _
    %2574 = vsyncpa [#allocation7], 1
    %s2575 = scalar_lea.sflag [#allocation7], 1
    %2576 = vsyncpa %s2575, 1
    %2577 = vsyncpa [#allocation10], 1
    %s2578 = scalar_lea.sflag [#allocation10], 1
    %2579 = vsyncpa %s2578, 1
    %2580 = vsyncpa [#allocation8], 1
    %s2581 = scalar_lea.sflag [#allocation8], 1
    %2582 = vsyncpa %s2581, 1

</llo_original>
